<compile_context>
chip_gen: v6e
topology: v6e:2x2x1
jax: 0.10.0
libtpu: 0.0.40
codegen_flags: <defaults>
</compile_context>

<pallas_src>
import math

import jax
import jax.numpy as jnp
from jax.experimental import pallas as pl
from jax.experimental.pallas import tpu as pltpu


def make_mha_kernel(no_heads: int, mxu_dtype):
    def mha_kernel(q_ref, k_ref, v_ref,
                   wq_ref, wk_ref, wv_ref, wo_ref, bo_ref,
                   out_ref,
                   qh_ref, kh_ref, vh_ref, m_ref, l_ref, acc_ref):
        ki = pl.program_id(2)
        nk = pl.num_programs(2)

        # ---- once per (batch, q-tile): project Q, reset online-softmax state
        @pl.when(ki == 0)
        def _():
            q_in = q_ref[0].astype(mxu_dtype)                        # (TQ, E)
            for h in range(no_heads):                                # static idx
                qh_ref[h] = jnp.dot(
                    q_in, wq_ref[h],
                    preferred_element_type=jnp.float32).astype(mxu_dtype)
            m_ref[...] = jnp.full(m_ref.shape, -jnp.inf, dtype=m_ref.dtype)
            l_ref[...] = jnp.zeros(l_ref.shape, dtype=l_ref.dtype)
            acc_ref[...] = jnp.zeros(acc_ref.shape, dtype=acc_ref.dtype)

        # ---- project the current K/V tile into per-head layout (H, TK, D)
        k_in = k_ref[0].astype(mxu_dtype)                            # (TK, E)
        v_in = v_ref[0].astype(mxu_dtype)                            # (TK, E)
        for h in range(no_heads):
            kh_ref[h] = jnp.dot(k_in, wk_ref[h],
                                preferred_element_type=jnp.float32).astype(mxu_dtype)
            vh_ref[h] = jnp.dot(v_in, wv_ref[h],
                                preferred_element_type=jnp.float32).astype(mxu_dtype)

        q = qh_ref[...]                                              # (H, TQ, D)
        k = kh_ref[...]                                              # (H, TK, D)
        v = vh_ref[...]                                              # (H, TK, D)

        # scores; 1/sqrt(D) already folded into Wq on the host
        s = jnp.einsum("hqd,hkd->hqk", q, k,
                       preferred_element_type=jnp.float32)           # (H,TQ,TK) f32

        # ---- online softmax update (elementwise math in f32)
        m_prev = m_ref[...]                                          # (H, TQ, 1)
        m_new = jnp.maximum(m_prev, jnp.max(s, axis=-1, keepdims=True))
        alpha = jnp.exp(m_prev - m_new)                              # (H, TQ, 1)
        p = jnp.exp(s - m_new)                                       # (H, TQ, TK)
        l_ref[...] = alpha * l_ref[...] + jnp.sum(p, axis=-1, keepdims=True)
        acc_ref[...] = alpha * acc_ref[...] + jnp.einsum(
            "hqk,hkd->hqd", p.astype(mxu_dtype), v,
            preferred_element_type=jnp.float32)
        m_ref[...] = m_new

        # ---- epilogue: normalize + accumulated output projection + bias
        @pl.when(ki == nk - 1)
        def _():
            inv_l = pl.reciprocal(l_ref[...], approx=True)           # EUP slot
            head_out = acc_ref[...] * inv_l                          # (H, TQ, D)
            out = jnp.dot(head_out[0].astype(mxu_dtype), wo_ref[0],
                          preferred_element_type=jnp.float32)
            for h in range(1, no_heads):
                out = out + jnp.dot(head_out[h].astype(mxu_dtype), wo_ref[h],
                                    preferred_element_type=jnp.float32)
            out = out + bo_ref[...]                                  # (1,E) bcast
            out_ref[0] = out.astype(out_ref.dtype)

    return mha_kernel


def _pick_tile(n: int, target: int) -> int:
    """Largest divisor of n that is <= target and a multiple of 8 (sublane
    friendly); fall back to the full axis."""
    if n <= target:
        return n
    for t in range(target, 7, -1):
        if n % t == 0 and t % 8 == 0:
            return t
    return n


def multi_head_attention(key, query, value, params, no_heads: int, *,
                         mxu_dtype=jnp.bfloat16,
                         q_tile: int = 256, k_tile: int = 512):
    """key, value: (B, S, E); query: (B, Sq, E).
    params = (wq_t, wk_t, wv_t, wo_t, b_o): Linear weights pre-transposed to
    (in_dim, out_dim) so the kernel computes x @ W (== PyTorch x @ W.T);
    bias (1, E) or (E,).
    """
    # TODO(synk): boolean `mask` (attention_mask[mask == 0] = -inf) not wired in.
    B, Sk, E = key.shape
    Sq = query.shape[1]
    assert E % no_heads == 0
    D = E // no_heads

    wq_t, wk_t, wv_t, wo_t, b_o = params

    # Host-side weight prep: fold 1/sqrt(D) into Wq, reshape to per-head layout
    # so the kernel never lane-slices, cast MXU operands to mxu_dtype.
    scale = 1.0 / math.sqrt(D)
    wq_h = (wq_t * scale).reshape(E, no_heads, D).transpose(1, 0, 2)  # (H,E,D)
    wk_h = wk_t.reshape(E, no_heads, D).transpose(1, 0, 2)            # (H,E,D)
    wv_h = wv_t.reshape(E, no_heads, D).transpose(1, 0, 2)            # (H,E,D)
    wo_h = wo_t.reshape(no_heads, D, E)                               # (H,D,E)
    wq_h, wk_h, wv_h, wo_h = (w.astype(mxu_dtype)
                              for w in (wq_h, wk_h, wv_h, wo_h))
    b_o = jnp.asarray(b_o, jnp.float32).reshape(1, E)

    tq = _pick_tile(Sq, q_tile)
    tk = _pick_tile(Sk, k_tile)
    grid = (B, Sq // tq, Sk // tk)

    kernel = make_mha_kernel(no_heads, mxu_dtype)

    # Explicit VMEM budget from the tile footprint (with ~2x headroom) instead
    # of relying on the default scoped limit.
    isz_in = jnp.dtype(query.dtype).itemsize
    isz_w = jnp.dtype(mxu_dtype).itemsize
    fp = 2 * (tq + 2 * tk) * E * isz_in             # double-buffered q/k/v tiles
    fp += 2 * tq * E * isz_in                       # output tile
    fp += 2 * (4 * E * E * isz_w + E * 4)           # resident weights + bias
    fp += (tq + 2 * tk) * E * isz_w                 # per-head q/k/v scratch
    fp += (tq * E + 2 * tq * no_heads) * 4          # acc + m/l scratch
    fp += no_heads * tq * tk * 4                    # live score tile
    vmem_limit = int(min(max(2 * fp, 16 * 1024 * 1024), 100 * 1024 * 1024))

    grid_spec = pltpu.PrefetchScalarGridSpec(
        num_scalar_prefetch=0,
        grid=grid,
        in_specs=[
            pl.BlockSpec((1, tq, E), lambda b, qi, ki: (b, qi, 0)),       # query
            pl.BlockSpec((1, tk, E), lambda b, qi, ki: (b, ki, 0)),       # key
            pl.BlockSpec((1, tk, E), lambda b, qi, ki: (b, ki, 0)),       # value
            pl.BlockSpec((no_heads, E, D), lambda b, qi, ki: (0, 0, 0)),  # Wq
            pl.BlockSpec((no_heads, E, D), lambda b, qi, ki: (0, 0, 0)),  # Wk
            pl.BlockSpec((no_heads, E, D), lambda b, qi, ki: (0, 0, 0)),  # Wv
            pl.BlockSpec((no_heads, D, E), lambda b, qi, ki: (0, 0, 0)),  # Wout
            pl.BlockSpec((1, E), lambda b, qi, ki: (0, 0)),               # bias
        ],
        out_specs=pl.BlockSpec((1, tq, E), lambda b, qi, ki: (b, qi, 0)),
        scratch_shapes=[
            pltpu.VMEM((no_heads, tq, D), mxu_dtype),    # projected Q (per q-tile)
            pltpu.VMEM((no_heads, tk, D), mxu_dtype),    # projected K tile
            pltpu.VMEM((no_heads, tk, D), mxu_dtype),    # projected V tile
            pltpu.VMEM((no_heads, tq, 1), jnp.float32),  # running max
            pltpu.VMEM((no_heads, tq, 1), jnp.float32),  # running sum
            pltpu.VMEM((no_heads, tq, D), jnp.float32),  # unnormalized P@V acc
        ],
    )

    return pl.pallas_call(
        kernel,
        out_shape=jax.ShapeDtypeStruct((B, Sq, E), query.dtype),
        grid_spec=grid_spec,
        compiler_params=pltpu.CompilerParams(
            dimension_semantics=("parallel", "parallel", "arbitrary"),
            vmem_limit_bytes=vmem_limit,
        ),
    )(query, key, value, wq_h, wk_h, wv_h, wo_h, b_o)


def reference_mha(key, query, value, params, no_heads: int):
    """Pure-JAX replica of the PyTorch forward (mask=None), f32 throughout."""
    wq_t, wk_t, wv_t, wo_t, b_o = params
    B, S, E = key.shape
    Sq = query.shape[1]
    D = E // no_heads
    k = key @ wk_t
    q = query @ wq_t
    v = value @ wv_t
    k = k.reshape(B, S, no_heads, D).transpose(0, 2, 1, 3)
    q = q.reshape(B, Sq, no_heads, D).transpose(0, 2, 1, 3)
    v = v.reshape(B, S, no_heads, D).transpose(0, 2, 1, 3)
    att = jnp.einsum("bhqd,bhkd->bhqk", q, k) / (D ** 0.5)
    att = jax.nn.softmax(att, axis=-1)
    val = jnp.einsum("bhqk,bhkd->bhqd", att, v)
    val = val.transpose(0, 2, 1, 3).reshape(B, Sq, E)
    return val @ wo_t + jnp.reshape(b_o, (1, E))


def _make_params(key_root, E):
    kwq, kwk, kwv, kwo, kbo = jax.random.split(key_root, 5)
    wscale = 1.0 / (E ** 0.5)
    wq_t = jax.random.uniform(kwq, (E, E), jnp.float32, -wscale, wscale)
    wk_t = jax.random.uniform(kwk, (E, E), jnp.float32, -wscale, wscale)
    wv_t = jax.random.uniform(kwv, (E, E), jnp.float32, -wscale, wscale)
    wo_t = jax.random.uniform(kwo, (E, E), jnp.float32, -wscale, wscale)
    b_o = jax.random.uniform(kbo, (1, E), jnp.float32, -wscale, wscale)
    return (wq_t, wk_t, wv_t, wo_t, b_o)


if __name__ == "__main__":
    root = jax.random.PRNGKey(0)
    k_small, k_big = jax.random.split(root, 2)

    # ---------------- small shape (single tile per axis) ----------------
    B, S, E, H = 2, 8, 32, 4  # batch, seq, embedding_dim, no_heads
    kk, kq, kv, kp = jax.random.split(k_small, 4)
    key_x = jax.random.normal(kk, (B, S, E), dtype=jnp.float32)
    query_x = jax.random.normal(kq, (B, S, E), dtype=jnp.float32)
    value_x = jax.random.normal(kv, (B, S, E), dtype=jnp.float32)
    params = _make_params(kp, E)

    ref = reference_mha(key_x, query_x, value_x, params, H)

    # default path: bf16 MXU operands, f32 accumulation / softmax
    out_bf16 = multi_head_attention(key_x, query_x, value_x, params, H)
    out_bf16 = jax.block_until_ready(out_bf16)
    assert out_bf16.shape == (B, S, E)
    assert jnp.allclose(out_bf16, ref, atol=3e-2, rtol=3e-2), "bf16 path mismatch"

    # full-f32 MXU path for a tighter numeric check
    out_f32 = multi_head_attention(key_x, query_x, value_x, params, H,
                                   mxu_dtype=jnp.float32)
    out_f32 = jax.block_until_ready(out_f32)
    assert jnp.allclose(out_f32, ref, atol=1e-2, rtol=1e-2), "f32 path mismatch"

    # ------- moderate shape exercising the multi-tile flash path --------
    B2, S2, E2, H2 = 2, 256, 128, 4
    kk2, kq2, kv2, kp2 = jax.random.split(k_big, 4)
    key_x2 = jax.random.normal(kk2, (B2, S2, E2), dtype=jnp.float32)
    query_x2 = jax.random.normal(kq2, (B2, S2, E2), dtype=jnp.float32)
    value_x2 = jax.random.normal(kv2, (B2, S2, E2), dtype=jnp.float32)
    params2 = _make_params(kp2, E2)

    ref2 = reference_mha(key_x2, query_x2, value_x2, params2, H2)
    out2 = multi_head_attention(key_x2, query_x2, value_x2, params2, H2,
                                mxu_dtype=jnp.float32,
                                q_tile=64, k_tile=128)   # 4 q-tiles x 2 k-tiles
    out2 = jax.block_until_ready(out2)
    assert out2.shape == (B2, S2, E2)
    assert jnp.allclose(out2, ref2, atol=1e-2, rtol=1e-2), "multi-tile mismatch"

    print("KERNEL_OK")
</pallas_src>

<mosaic_0001>
module attributes {stable_mosaic.version = 11 : i64} {
  func.func @mha_kernel(%arg0: i32, %arg1: i32, %arg2: i32, %arg3: memref<1x8x32xf32, #tpu.memory_space<vmem>>, %arg4: memref<1x8x32xf32, #tpu.memory_space<vmem>>, %arg5: memref<1x8x32xf32, #tpu.memory_space<vmem>>, %arg6: memref<4x32x8xbf16, #tpu.memory_space<vmem>>, %arg7: memref<4x32x8xbf16, #tpu.memory_space<vmem>>, %arg8: memref<4x32x8xbf16, #tpu.memory_space<vmem>>, %arg9: memref<4x8x32xbf16, #tpu.memory_space<vmem>>, %arg10: memref<1x32xf32, #tpu.memory_space<vmem>>, %arg11: memref<1x8x32xf32, #tpu.memory_space<vmem>>, %arg12: memref<4x8x8xbf16, #tpu.memory_space<vmem>>, %arg13: memref<4x8x8xbf16, #tpu.memory_space<vmem>>, %arg14: memref<4x8x8xbf16, #tpu.memory_space<vmem>>, %arg15: memref<4x8x1xf32, #tpu.memory_space<vmem>>, %arg16: memref<4x8x1xf32, #tpu.memory_space<vmem>>, %arg17: memref<4x8x8xf32, #tpu.memory_space<vmem>>) attributes {dimension_semantics = [#tpu.dimension_semantics<parallel>, #tpu.dimension_semantics<parallel>, #tpu.dimension_semantics<arbitrary>], iteration_bounds = array<i64: 2, 1, 1>, scalar_prefetch = 0 : i64, scratch_operands = 6 : i64, tpu.core_type = #tpu.core_type<tc>, window_params = [{transform_indices = @transform_0, window_bounds = array<i64: 1, 8, 32>}, {transform_indices = @transform_1, window_bounds = array<i64: 1, 8, 32>}, {transform_indices = @transform_2, window_bounds = array<i64: 1, 8, 32>}, {pipeline_mode = #tpu.pipeline_mode<synchronous>, transform_indices = @transform_3, window_bounds = array<i64: 4, 32, 8>}, {pipeline_mode = #tpu.pipeline_mode<synchronous>, transform_indices = @transform_4, window_bounds = array<i64: 4, 32, 8>}, {pipeline_mode = #tpu.pipeline_mode<synchronous>, transform_indices = @transform_5, window_bounds = array<i64: 4, 32, 8>}, {pipeline_mode = #tpu.pipeline_mode<synchronous>, transform_indices = @transform_6, window_bounds = array<i64: 4, 8, 32>}, {pipeline_mode = #tpu.pipeline_mode<synchronous>, transform_indices = @transform_7, window_bounds = array<i64: 1, 32>}, {transform_indices = @transform_8, window_bounds = array<i64: 1, 8, 32>}]} {
    %c0_i32 = arith.constant 0 : i32
    %0 = arith.cmpi eq, %arg2, %c0_i32 : i32
    %1 = arith.extui %0 : i1 to i32
    %c0_i32_0 = arith.constant 0 : i32
    %2 = arith.cmpi ne, %1, %c0_i32_0 : i32
    scf.if %2 {
      %c0_91 = arith.constant 0 : index
      %c0_92 = arith.constant 0 : index
      %c0_93 = arith.constant 0 : index
      %95 = vector.load %arg3[%c0_91, %c0_92, %c0_93] : memref<1x8x32xf32, #tpu.memory_space<vmem>>, vector<1x8x32xf32>
      %96 = vector.shape_cast %95 : vector<1x8x32xf32> to vector<8x32xf32>
      %97 = arith.truncf %96 : vector<8x32xf32> to vector<8x32xbf16>
      %c0_94 = arith.constant 0 : index
      %c0_95 = arith.constant 0 : index
      %c0_96 = arith.constant 0 : index
      %98 = vector.load %arg6[%c0_94, %c0_95, %c0_96] : memref<4x32x8xbf16, #tpu.memory_space<vmem>>, vector<1x32x8xbf16>
      %99 = vector.shape_cast %98 : vector<1x32x8xbf16> to vector<32x8xbf16>
      %cst_97 = arith.constant dense<0.000000e+00> : vector<8x8xf32>
      %100 = tpu.matmul %97, %99, %cst_97 {dimension_numbers = #tpu.dot_dimension_numbers<[1], [0], [0], [1], [0, 0, 1, 1], [], []>} : vector<8x32xbf16>, vector<32x8xbf16>, vector<8x8xf32> -> vector<8x8xf32>
      %101 = arith.truncf %100 : vector<8x8xf32> to vector<8x8xbf16>
      %c0_98 = arith.constant 0 : index
      %c0_99 = arith.constant 0 : index
      %c0_100 = arith.constant 0 : index
      %102 = vector.load %arg12[%c0_98, %c0_99, %c0_100] : memref<4x8x8xbf16, #tpu.memory_space<vmem>>, vector<1x8x8xbf16>
      %103 = vector.shape_cast %102 : vector<1x8x8xbf16> to vector<8x8xbf16>
      %104 = vector.shape_cast %101 : vector<8x8xbf16> to vector<1x8x8xbf16>
      tpu.vector_store %arg12[%c0_98, %c0_99, %c0_100], %104 {strides = array<i32>} : memref<4x8x8xbf16, #tpu.memory_space<vmem>>, vector<1x8x8xbf16>,
      %c1_101 = arith.constant 1 : index
      %c0_102 = arith.constant 0 : index
      %c0_103 = arith.constant 0 : index
      %105 = vector.load %arg6[%c1_101, %c0_102, %c0_103] : memref<4x32x8xbf16, #tpu.memory_space<vmem>>, vector<1x32x8xbf16>
      %106 = vector.shape_cast %105 : vector<1x32x8xbf16> to vector<32x8xbf16>
      %cst_104 = arith.constant dense<0.000000e+00> : vector<8x8xf32>
      %107 = tpu.matmul %97, %106, %cst_104 {dimension_numbers = #tpu.dot_dimension_numbers<[1], [0], [0], [1], [0, 0, 1, 1], [], []>} : vector<8x32xbf16>, vector<32x8xbf16>, vector<8x8xf32> -> vector<8x8xf32>
      %108 = arith.truncf %107 : vector<8x8xf32> to vector<8x8xbf16>
      %c1_105 = arith.constant 1 : index
      %c0_106 = arith.constant 0 : index
      %c0_107 = arith.constant 0 : index
      %109 = vector.load %arg12[%c1_105, %c0_106, %c0_107] : memref<4x8x8xbf16, #tpu.memory_space<vmem>>, vector<1x8x8xbf16>
      %110 = vector.shape_cast %109 : vector<1x8x8xbf16> to vector<8x8xbf16>
      %111 = vector.shape_cast %108 : vector<8x8xbf16> to vector<1x8x8xbf16>
      tpu.vector_store %arg12[%c1_105, %c0_106, %c0_107], %111 {strides = array<i32>} : memref<4x8x8xbf16, #tpu.memory_space<vmem>>, vector<1x8x8xbf16>,
      %c2_108 = arith.constant 2 : index
      %c0_109 = arith.constant 0 : index
      %c0_110 = arith.constant 0 : index
      %112 = vector.load %arg6[%c2_108, %c0_109, %c0_110] : memref<4x32x8xbf16, #tpu.memory_space<vmem>>, vector<1x32x8xbf16>
      %113 = vector.shape_cast %112 : vector<1x32x8xbf16> to vector<32x8xbf16>
      %cst_111 = arith.constant dense<0.000000e+00> : vector<8x8xf32>
      %114 = tpu.matmul %97, %113, %cst_111 {dimension_numbers = #tpu.dot_dimension_numbers<[1], [0], [0], [1], [0, 0, 1, 1], [], []>} : vector<8x32xbf16>, vector<32x8xbf16>, vector<8x8xf32> -> vector<8x8xf32>
      %115 = arith.truncf %114 : vector<8x8xf32> to vector<8x8xbf16>
      %c2_112 = arith.constant 2 : index
      %c0_113 = arith.constant 0 : index
      %c0_114 = arith.constant 0 : index
      %116 = vector.load %arg12[%c2_112, %c0_113, %c0_114] : memref<4x8x8xbf16, #tpu.memory_space<vmem>>, vector<1x8x8xbf16>
      %117 = vector.shape_cast %116 : vector<1x8x8xbf16> to vector<8x8xbf16>
      %118 = vector.shape_cast %115 : vector<8x8xbf16> to vector<1x8x8xbf16>
      tpu.vector_store %arg12[%c2_112, %c0_113, %c0_114], %118 {strides = array<i32>} : memref<4x8x8xbf16, #tpu.memory_space<vmem>>, vector<1x8x8xbf16>,
      %c3_115 = arith.constant 3 : index
      %c0_116 = arith.constant 0 : index
      %c0_117 = arith.constant 0 : index
      %119 = vector.load %arg6[%c3_115, %c0_116, %c0_117] : memref<4x32x8xbf16, #tpu.memory_space<vmem>>, vector<1x32x8xbf16>
      %120 = vector.shape_cast %119 : vector<1x32x8xbf16> to vector<32x8xbf16>
      %cst_118 = arith.constant dense<0.000000e+00> : vector<8x8xf32>
      %121 = tpu.matmul %97, %120, %cst_118 {dimension_numbers = #tpu.dot_dimension_numbers<[1], [0], [0], [1], [0, 0, 1, 1], [], []>} : vector<8x32xbf16>, vector<32x8xbf16>, vector<8x8xf32> -> vector<8x8xf32>
      %122 = arith.truncf %121 : vector<8x8xf32> to vector<8x8xbf16>
      %c3_119 = arith.constant 3 : index
      %c0_120 = arith.constant 0 : index
      %c0_121 = arith.constant 0 : index
      %123 = vector.load %arg12[%c3_119, %c0_120, %c0_121] : memref<4x8x8xbf16, #tpu.memory_space<vmem>>, vector<1x8x8xbf16>
      %124 = vector.shape_cast %123 : vector<1x8x8xbf16> to vector<8x8xbf16>
      %125 = vector.shape_cast %122 : vector<8x8xbf16> to vector<1x8x8xbf16>
      tpu.vector_store %arg12[%c3_119, %c0_120, %c0_121], %125 {strides = array<i32>} : memref<4x8x8xbf16, #tpu.memory_space<vmem>>, vector<1x8x8xbf16>,
      %cst_122 = arith.constant 0xFF800000 : f32
      %126 = vector.broadcast %cst_122 : f32 to vector<4x8x1xf32>
      %c0_123 = arith.constant 0 : index
      %c0_124 = arith.constant 0 : index
      %c0_125 = arith.constant 0 : index
      %127 = vector.load %arg15[%c0_123, %c0_124, %c0_125] : memref<4x8x1xf32, #tpu.memory_space<vmem>>, vector<4x8x1xf32>
      tpu.vector_store %arg15[%c0_123, %c0_124, %c0_125], %126 {strides = array<i32>} : memref<4x8x1xf32, #tpu.memory_space<vmem>>, vector<4x8x1xf32>,
      %cst_126 = arith.constant 0.000000e+00 : f32
      %128 = vector.broadcast %cst_126 : f32 to vector<4x8x1xf32>
      %c0_127 = arith.constant 0 : index
      %c0_128 = arith.constant 0 : index
      %c0_129 = arith.constant 0 : index
      %129 = vector.load %arg16[%c0_127, %c0_128, %c0_129] : memref<4x8x1xf32, #tpu.memory_space<vmem>>, vector<4x8x1xf32>
      tpu.vector_store %arg16[%c0_127, %c0_128, %c0_129], %128 {strides = array<i32>} : memref<4x8x1xf32, #tpu.memory_space<vmem>>, vector<4x8x1xf32>,
      %cst_130 = arith.constant 0.000000e+00 : f32
      %130 = vector.broadcast %cst_130 : f32 to vector<4x8x8xf32>
      %c0_131 = arith.constant 0 : index
      %c0_132 = arith.constant 0 : index
      %c0_133 = arith.constant 0 : index
      %131 = vector.load %arg17[%c0_131, %c0_132, %c0_133] : memref<4x8x8xf32, #tpu.memory_space<vmem>>, vector<4x8x8xf32>
      tpu.vector_store %arg17[%c0_131, %c0_132, %c0_133], %130 {strides = array<i32>} : memref<4x8x8xf32, #tpu.memory_space<vmem>>, vector<4x8x8xf32>,
    } else {
    }
    %c0 = arith.constant 0 : index
    %c0_1 = arith.constant 0 : index
    %c0_2 = arith.constant 0 : index
    %3 = vector.load %arg4[%c0, %c0_1, %c0_2] : memref<1x8x32xf32, #tpu.memory_space<vmem>>, vector<1x8x32xf32>
    %4 = vector.shape_cast %3 : vector<1x8x32xf32> to vector<8x32xf32>
    %5 = arith.truncf %4 : vector<8x32xf32> to vector<8x32xbf16>
    %c0_3 = arith.constant 0 : index
    %c0_4 = arith.constant 0 : index
    %c0_5 = arith.constant 0 : index
    %6 = vector.load %arg5[%c0_3, %c0_4, %c0_5] : memref<1x8x32xf32, #tpu.memory_space<vmem>>, vector<1x8x32xf32>
    %7 = vector.shape_cast %6 : vector<1x8x32xf32> to vector<8x32xf32>
    %8 = arith.truncf %7 : vector<8x32xf32> to vector<8x32xbf16>
    %c0_6 = arith.constant 0 : index
    %c0_7 = arith.constant 0 : index
    %c0_8 = arith.constant 0 : index
    %9 = vector.load %arg7[%c0_6, %c0_7, %c0_8] : memref<4x32x8xbf16, #tpu.memory_space<vmem>>, vector<1x32x8xbf16>
    %10 = vector.shape_cast %9 : vector<1x32x8xbf16> to vector<32x8xbf16>
    %cst = arith.constant dense<0.000000e+00> : vector<8x8xf32>
    %11 = tpu.matmul %5, %10, %cst {dimension_numbers = #tpu.dot_dimension_numbers<[1], [0], [0], [1], [0, 0, 1, 1], [], []>} : vector<8x32xbf16>, vector<32x8xbf16>, vector<8x8xf32> -> vector<8x8xf32>
    %12 = arith.truncf %11 : vector<8x8xf32> to vector<8x8xbf16>
    %c0_9 = arith.constant 0 : index
    %c0_10 = arith.constant 0 : index
    %c0_11 = arith.constant 0 : index
    %13 = vector.load %arg13[%c0_9, %c0_10, %c0_11] : memref<4x8x8xbf16, #tpu.memory_space<vmem>>, vector<1x8x8xbf16>
    %14 = vector.shape_cast %13 : vector<1x8x8xbf16> to vector<8x8xbf16>
    %15 = vector.shape_cast %12 : vector<8x8xbf16> to vector<1x8x8xbf16>
    tpu.vector_store %arg13[%c0_9, %c0_10, %c0_11], %15 {strides = array<i32>} : memref<4x8x8xbf16, #tpu.memory_space<vmem>>, vector<1x8x8xbf16>,
    %c0_12 = arith.constant 0 : index
    %c0_13 = arith.constant 0 : index
    %c0_14 = arith.constant 0 : index
    %16 = vector.load %arg8[%c0_12, %c0_13, %c0_14] : memref<4x32x8xbf16, #tpu.memory_space<vmem>>, vector<1x32x8xbf16>
    %17 = vector.shape_cast %16 : vector<1x32x8xbf16> to vector<32x8xbf16>
    %cst_15 = arith.constant dense<0.000000e+00> : vector<8x8xf32>
    %18 = tpu.matmul %8, %17, %cst_15 {dimension_numbers = #tpu.dot_dimension_numbers<[1], [0], [0], [1], [0, 0, 1, 1], [], []>} : vector<8x32xbf16>, vector<32x8xbf16>, vector<8x8xf32> -> vector<8x8xf32>
    %19 = arith.truncf %18 : vector<8x8xf32> to vector<8x8xbf16>
    %c0_16 = arith.constant 0 : index
    %c0_17 = arith.constant 0 : index
    %c0_18 = arith.constant 0 : index
    %20 = vector.load %arg14[%c0_16, %c0_17, %c0_18] : memref<4x8x8xbf16, #tpu.memory_space<vmem>>, vector<1x8x8xbf16>
    %21 = vector.shape_cast %20 : vector<1x8x8xbf16> to vector<8x8xbf16>
    %22 = vector.shape_cast %19 : vector<8x8xbf16> to vector<1x8x8xbf16>
    tpu.vector_store %arg14[%c0_16, %c0_17, %c0_18], %22 {strides = array<i32>} : memref<4x8x8xbf16, #tpu.memory_space<vmem>>, vector<1x8x8xbf16>,
    %c1 = arith.constant 1 : index
    %c0_19 = arith.constant 0 : index
    %c0_20 = arith.constant 0 : index
    %23 = vector.load %arg7[%c1, %c0_19, %c0_20] : memref<4x32x8xbf16, #tpu.memory_space<vmem>>, vector<1x32x8xbf16>
    %24 = vector.shape_cast %23 : vector<1x32x8xbf16> to vector<32x8xbf16>
    %cst_21 = arith.constant dense<0.000000e+00> : vector<8x8xf32>
    %25 = tpu.matmul %5, %24, %cst_21 {dimension_numbers = #tpu.dot_dimension_numbers<[1], [0], [0], [1], [0, 0, 1, 1], [], []>} : vector<8x32xbf16>, vector<32x8xbf16>, vector<8x8xf32> -> vector<8x8xf32>
    %26 = arith.truncf %25 : vector<8x8xf32> to vector<8x8xbf16>
    %c1_22 = arith.constant 1 : index
    %c0_23 = arith.constant 0 : index
    %c0_24 = arith.constant 0 : index
    %27 = vector.load %arg13[%c1_22, %c0_23, %c0_24] : memref<4x8x8xbf16, #tpu.memory_space<vmem>>, vector<1x8x8xbf16>
    %28 = vector.shape_cast %27 : vector<1x8x8xbf16> to vector<8x8xbf16>
    %29 = vector.shape_cast %26 : vector<8x8xbf16> to vector<1x8x8xbf16>
    tpu.vector_store %arg13[%c1_22, %c0_23, %c0_24], %29 {strides = array<i32>} : memref<4x8x8xbf16, #tpu.memory_space<vmem>>, vector<1x8x8xbf16>,
    %c1_25 = arith.constant 1 : index
    %c0_26 = arith.constant 0 : index
    %c0_27 = arith.constant 0 : index
    %30 = vector.load %arg8[%c1_25, %c0_26, %c0_27] : memref<4x32x8xbf16, #tpu.memory_space<vmem>>, vector<1x32x8xbf16>
    %31 = vector.shape_cast %30 : vector<1x32x8xbf16> to vector<32x8xbf16>
    %cst_28 = arith.constant dense<0.000000e+00> : vector<8x8xf32>
    %32 = tpu.matmul %8, %31, %cst_28 {dimension_numbers = #tpu.dot_dimension_numbers<[1], [0], [0], [1], [0, 0, 1, 1], [], []>} : vector<8x32xbf16>, vector<32x8xbf16>, vector<8x8xf32> -> vector<8x8xf32>
    %33 = arith.truncf %32 : vector<8x8xf32> to vector<8x8xbf16>
    %c1_29 = arith.constant 1 : index
    %c0_30 = arith.constant 0 : index
    %c0_31 = arith.constant 0 : index
    %34 = vector.load %arg14[%c1_29, %c0_30, %c0_31] : memref<4x8x8xbf16, #tpu.memory_space<vmem>>, vector<1x8x8xbf16>
    %35 = vector.shape_cast %34 : vector<1x8x8xbf16> to vector<8x8xbf16>
    %36 = vector.shape_cast %33 : vector<8x8xbf16> to vector<1x8x8xbf16>
    tpu.vector_store %arg14[%c1_29, %c0_30, %c0_31], %36 {strides = array<i32>} : memref<4x8x8xbf16, #tpu.memory_space<vmem>>, vector<1x8x8xbf16>,
    %c2 = arith.constant 2 : index
    %c0_32 = arith.constant 0 : index
    %c0_33 = arith.constant 0 : index
    %37 = vector.load %arg7[%c2, %c0_32, %c0_33] : memref<4x32x8xbf16, #tpu.memory_space<vmem>>, vector<1x32x8xbf16>
    %38 = vector.shape_cast %37 : vector<1x32x8xbf16> to vector<32x8xbf16>
    %cst_34 = arith.constant dense<0.000000e+00> : vector<8x8xf32>
    %39 = tpu.matmul %5, %38, %cst_34 {dimension_numbers = #tpu.dot_dimension_numbers<[1], [0], [0], [1], [0, 0, 1, 1], [], []>} : vector<8x32xbf16>, vector<32x8xbf16>, vector<8x8xf32> -> vector<8x8xf32>
    %40 = arith.truncf %39 : vector<8x8xf32> to vector<8x8xbf16>
    %c2_35 = arith.constant 2 : index
    %c0_36 = arith.constant 0 : index
    %c0_37 = arith.constant 0 : index
    %41 = vector.load %arg13[%c2_35, %c0_36, %c0_37] : memref<4x8x8xbf16, #tpu.memory_space<vmem>>, vector<1x8x8xbf16>
    %42 = vector.shape_cast %41 : vector<1x8x8xbf16> to vector<8x8xbf16>
    %43 = vector.shape_cast %40 : vector<8x8xbf16> to vector<1x8x8xbf16>
    tpu.vector_store %arg13[%c2_35, %c0_36, %c0_37], %43 {strides = array<i32>} : memref<4x8x8xbf16, #tpu.memory_space<vmem>>, vector<1x8x8xbf16>,
    %c2_38 = arith.constant 2 : index
    %c0_39 = arith.constant 0 : index
    %c0_40 = arith.constant 0 : index
    %44 = vector.load %arg8[%c2_38, %c0_39, %c0_40] : memref<4x32x8xbf16, #tpu.memory_space<vmem>>, vector<1x32x8xbf16>
    %45 = vector.shape_cast %44 : vector<1x32x8xbf16> to vector<32x8xbf16>
    %cst_41 = arith.constant dense<0.000000e+00> : vector<8x8xf32>
    %46 = tpu.matmul %8, %45, %cst_41 {dimension_numbers = #tpu.dot_dimension_numbers<[1], [0], [0], [1], [0, 0, 1, 1], [], []>} : vector<8x32xbf16>, vector<32x8xbf16>, vector<8x8xf32> -> vector<8x8xf32>
    %47 = arith.truncf %46 : vector<8x8xf32> to vector<8x8xbf16>
    %c2_42 = arith.constant 2 : index
    %c0_43 = arith.constant 0 : index
    %c0_44 = arith.constant 0 : index
    %48 = vector.load %arg14[%c2_42, %c0_43, %c0_44] : memref<4x8x8xbf16, #tpu.memory_space<vmem>>, vector<1x8x8xbf16>
    %49 = vector.shape_cast %48 : vector<1x8x8xbf16> to vector<8x8xbf16>
    %50 = vector.shape_cast %47 : vector<8x8xbf16> to vector<1x8x8xbf16>
    tpu.vector_store %arg14[%c2_42, %c0_43, %c0_44], %50 {strides = array<i32>} : memref<4x8x8xbf16, #tpu.memory_space<vmem>>, vector<1x8x8xbf16>,
    %c3 = arith.constant 3 : index
    %c0_45 = arith.constant 0 : index
    %c0_46 = arith.constant 0 : index
    %51 = vector.load %arg7[%c3, %c0_45, %c0_46] : memref<4x32x8xbf16, #tpu.memory_space<vmem>>, vector<1x32x8xbf16>
    %52 = vector.shape_cast %51 : vector<1x32x8xbf16> to vector<32x8xbf16>
    %cst_47 = arith.constant dense<0.000000e+00> : vector<8x8xf32>
    %53 = tpu.matmul %5, %52, %cst_47 {dimension_numbers = #tpu.dot_dimension_numbers<[1], [0], [0], [1], [0, 0, 1, 1], [], []>} : vector<8x32xbf16>, vector<32x8xbf16>, vector<8x8xf32> -> vector<8x8xf32>
    %54 = arith.truncf %53 : vector<8x8xf32> to vector<8x8xbf16>
    %c3_48 = arith.constant 3 : index
    %c0_49 = arith.constant 0 : index
    %c0_50 = arith.constant 0 : index
    %55 = vector.load %arg13[%c3_48, %c0_49, %c0_50] : memref<4x8x8xbf16, #tpu.memory_space<vmem>>, vector<1x8x8xbf16>
    %56 = vector.shape_cast %55 : vector<1x8x8xbf16> to vector<8x8xbf16>
    %57 = vector.shape_cast %54 : vector<8x8xbf16> to vector<1x8x8xbf16>
    tpu.vector_store %arg13[%c3_48, %c0_49, %c0_50], %57 {strides = array<i32>} : memref<4x8x8xbf16, #tpu.memory_space<vmem>>, vector<1x8x8xbf16>,
    %c3_51 = arith.constant 3 : index
    %c0_52 = arith.constant 0 : index
    %c0_53 = arith.constant 0 : index
    %58 = vector.load %arg8[%c3_51, %c0_52, %c0_53] : memref<4x32x8xbf16, #tpu.memory_space<vmem>>, vector<1x32x8xbf16>
    %59 = vector.shape_cast %58 : vector<1x32x8xbf16> to vector<32x8xbf16>
    %cst_54 = arith.constant dense<0.000000e+00> : vector<8x8xf32>
    %60 = tpu.matmul %8, %59, %cst_54 {dimension_numbers = #tpu.dot_dimension_numbers<[1], [0], [0], [1], [0, 0, 1, 1], [], []>} : vector<8x32xbf16>, vector<32x8xbf16>, vector<8x8xf32> -> vector<8x8xf32>
    %61 = arith.truncf %60 : vector<8x8xf32> to vector<8x8xbf16>
    %c3_55 = arith.constant 3 : index
    %c0_56 = arith.constant 0 : index
    %c0_57 = arith.constant 0 : index
    %62 = vector.load %arg14[%c3_55, %c0_56, %c0_57] : memref<4x8x8xbf16, #tpu.memory_space<vmem>>, vector<1x8x8xbf16>
    %63 = vector.shape_cast %62 : vector<1x8x8xbf16> to vector<8x8xbf16>
    %64 = vector.shape_cast %61 : vector<8x8xbf16> to vector<1x8x8xbf16>
    tpu.vector_store %arg14[%c3_55, %c0_56, %c0_57], %64 {strides = array<i32>} : memref<4x8x8xbf16, #tpu.memory_space<vmem>>, vector<1x8x8xbf16>,
    %c0_58 = arith.constant 0 : index
    %c0_59 = arith.constant 0 : index
    %c0_60 = arith.constant 0 : index
    %65 = vector.load %arg12[%c0_58, %c0_59, %c0_60] : memref<4x8x8xbf16, #tpu.memory_space<vmem>>, vector<4x8x8xbf16>
    %c0_61 = arith.constant 0 : index
    %c0_62 = arith.constant 0 : index
    %c0_63 = arith.constant 0 : index
    %66 = vector.load %arg13[%c0_61, %c0_62, %c0_63] : memref<4x8x8xbf16, #tpu.memory_space<vmem>>, vector<4x8x8xbf16>
    %c0_64 = arith.constant 0 : index
    %c0_65 = arith.constant 0 : index
    %c0_66 = arith.constant 0 : index
    %67 = vector.load %arg14[%c0_64, %c0_65, %c0_66] : memref<4x8x8xbf16, #tpu.memory_space<vmem>>, vector<4x8x8xbf16>
    "tpu.trace_start"() <{level = 10 : i32, message = "hqd,hkd->hqk"}> : () -> ()
    %cst_67 = arith.constant dense<0.000000e+00> : vector<4x8x8xf32>
    %68 = tpu.matmul %65, %66, %cst_67 {dimension_numbers = #tpu.dot_dimension_numbers<[2], [2], [1], [1], [0, 0, 0, 1, 1, 1], [0], [0]>} : vector<4x8x8xbf16>, vector<4x8x8xbf16>, vector<4x8x8xf32> -> vector<4x8x8xf32>
    "tpu.trace_stop"() : () -> ()
    %c0_68 = arith.constant 0 : index
    %c0_69 = arith.constant 0 : index
    %c0_70 = arith.constant 0 : index
    %69 = vector.load %arg15[%c0_68, %c0_69, %c0_70] : memref<4x8x1xf32, #tpu.memory_space<vmem>>, vector<4x8x1xf32>
    %cst_71 = arith.constant dense<0xFF800000> : vector<4x8xf32>
    %70 = vector.multi_reduction <maximumf>, %68, %cst_71 [2] : vector<4x8x8xf32> to vector<4x8xf32>
    %71 = vector.shape_cast %70 : vector<4x8xf32> to vector<4x8x1xf32>
    %72 = arith.maximumf %69, %71 : vector<4x8x1xf32>
    %73 = arith.subf %69, %72 : vector<4x8x1xf32>
    %74 = math.exp %73 : vector<4x8x1xf32>
    %75 = vector.broadcast %72 : vector<4x8x1xf32> to vector<4x8x8xf32>
    %76 = arith.subf %68, %75 : vector<4x8x8xf32>
    %77 = math.exp %76 : vector<4x8x8xf32>
    %c0_72 = arith.constant 0 : index
    %c0_73 = arith.constant 0 : index
    %c0_74 = arith.constant 0 : index
    %78 = vector.load %arg16[%c0_72, %c0_73, %c0_74] : memref<4x8x1xf32, #tpu.memory_space<vmem>>, vector<4x8x1xf32>
    %79 = arith.mulf %74, %78 : vector<4x8x1xf32>
    %cst_75 = arith.constant dense<0.000000e+00> : vector<4x8xf32>
    %80 = vector.multi_reduction <add>, %77, %cst_75 [2] : vector<4x8x8xf32> to vector<4x8xf32>
    %81 = vector.shape_cast %80 : vector<4x8xf32> to vector<4x8x1xf32>
    %82 = arith.addf %79, %81 : vector<4x8x1xf32>
    %c0_76 = arith.constant 0 : index
    %c0_77 = arith.constant 0 : index
    %c0_78 = arith.constant 0 : index
    %83 = vector.load %arg16[%c0_76, %c0_77, %c0_78] : memref<4x8x1xf32, #tpu.memory_space<vmem>>, vector<4x8x1xf32>
    tpu.vector_store %arg16[%c0_76, %c0_77, %c0_78], %82 {strides = array<i32>} : memref<4x8x1xf32, #tpu.memory_space<vmem>>, vector<4x8x1xf32>,
    %c0_79 = arith.constant 0 : index
    %c0_80 = arith.constant 0 : index
    %c0_81 = arith.constant 0 : index
    %84 = vector.load %arg17[%c0_79, %c0_80, %c0_81] : memref<4x8x8xf32, #tpu.memory_space<vmem>>, vector<4x8x8xf32>
    %85 = vector.broadcast %74 : vector<4x8x1xf32> to vector<4x8x8xf32>
    %86 = arith.mulf %85, %84 : vector<4x8x8xf32>
    %87 = arith.truncf %77 : vector<4x8x8xf32> to vector<4x8x8xbf16>
    "tpu.trace_start"() <{level = 10 : i32, message = "hqk,hkd->hqd"}> : () -> ()
    %cst_82 = arith.constant dense<0.000000e+00> : vector<4x8x8xf32>
    %88 = tpu.matmul %87, %67, %cst_82 {dimension_numbers = #tpu.dot_dimension_numbers<[2], [1], [1], [2], [0, 0, 0, 1, 1, 2], [0], [0]>} : vector<4x8x8xbf16>, vector<4x8x8xbf16>, vector<4x8x8xf32> -> vector<4x8x8xf32>
    "tpu.trace_stop"() : () -> ()
    %89 = arith.addf %86, %88 : vector<4x8x8xf32>
    %c0_83 = arith.constant 0 : index
    %c0_84 = arith.constant 0 : index
    %c0_85 = arith.constant 0 : index
    %90 = vector.load %arg17[%c0_83, %c0_84, %c0_85] : memref<4x8x8xf32, #tpu.memory_space<vmem>>, vector<4x8x8xf32>
    tpu.vector_store %arg17[%c0_83, %c0_84, %c0_85], %89 {strides = array<i32>} : memref<4x8x8xf32, #tpu.memory_space<vmem>>, vector<4x8x8xf32>,
    %c0_86 = arith.constant 0 : index
    %c0_87 = arith.constant 0 : index
    %c0_88 = arith.constant 0 : index
    %91 = vector.load %arg15[%c0_86, %c0_87, %c0_88] : memref<4x8x1xf32, #tpu.memory_space<vmem>>, vector<4x8x1xf32>
    tpu.vector_store %arg15[%c0_86, %c0_87, %c0_88], %72 {strides = array<i32>} : memref<4x8x1xf32, #tpu.memory_space<vmem>>, vector<4x8x1xf32>,
    %c0_i32_89 = arith.constant 0 : i32
    %92 = arith.cmpi eq, %arg2, %c0_i32_89 : i32
    %93 = arith.extui %92 : i1 to i32
    %c0_i32_90 = arith.constant 0 : i32
    %94 = arith.cmpi ne, %93, %c0_i32_90 : i32
    scf.if %94 {
      %c0_91 = arith.constant 0 : index
      %c0_92 = arith.constant 0 : index
      %c0_93 = arith.constant 0 : index
      %95 = vector.load %arg16[%c0_91, %c0_92, %c0_93] : memref<4x8x1xf32, #tpu.memory_space<vmem>>, vector<4x8x1xf32>
      %96 = tpu.reciprocal %95 {approx = true} : vector<4x8x1xf32> -> vector<4x8x1xf32>
      %c0_94 = arith.constant 0 : index
      %c0_95 = arith.constant 0 : index
      %c0_96 = arith.constant 0 : index
      %97 = vector.load %arg17[%c0_94, %c0_95, %c0_96] : memref<4x8x8xf32, #tpu.memory_space<vmem>>, vector<4x8x8xf32>
      %98 = vector.broadcast %96 : vector<4x8x1xf32> to vector<4x8x8xf32>
      %99 = arith.mulf %97, %98 : vector<4x8x8xf32>
      %100 = vector.extract_strided_slice %99 {offsets = [0, 0, 0], sizes = [1, 8, 8], strides = [1, 1, 1]} : vector<4x8x8xf32> to vector<1x8x8xf32>
      %101 = vector.shape_cast %100 : vector<1x8x8xf32> to vector<8x8xf32>
      %102 = arith.truncf %101 : vector<8x8xf32> to vector<8x8xbf16>
      %c0_97 = arith.constant 0 : index
      %c0_98 = arith.constant 0 : index
      %c0_99 = arith.constant 0 : index
      %103 = vector.load %arg9[%c0_97, %c0_98, %c0_99] : memref<4x8x32xbf16, #tpu.memory_space<vmem>>, vector<1x8x32xbf16>
      %104 = vector.shape_cast %103 : vector<1x8x32xbf16> to vector<8x32xbf16>
      %cst_100 = arith.constant dense<0.000000e+00> : vector<8x32xf32>
      %105 = tpu.matmul %102, %104, %cst_100 {dimension_numbers = #tpu.dot_dimension_numbers<[1], [0], [0], [1], [0, 0, 1, 1], [], []>} : vector<8x8xbf16>, vector<8x32xbf16>, vector<8x32xf32> -> vector<8x32xf32>
      %106 = vector.extract_strided_slice %99 {offsets = [1, 0, 0], sizes = [1, 8, 8], strides = [1, 1, 1]} : vector<4x8x8xf32> to vector<1x8x8xf32>
      %107 = vector.shape_cast %106 : vector<1x8x8xf32> to vector<8x8xf32>
      %108 = arith.truncf %107 : vector<8x8xf32> to vector<8x8xbf16>
      %c1_101 = arith.constant 1 : index
      %c0_102 = arith.constant 0 : index
      %c0_103 = arith.constant 0 : index
      %109 = vector.load %arg9[%c1_101, %c0_102, %c0_103] : memref<4x8x32xbf16, #tpu.memory_space<vmem>>, vector<1x8x32xbf16>
      %110 = vector.shape_cast %109 : vector<1x8x32xbf16> to vector<8x32xbf16>
      %cst_104 = arith.constant dense<0.000000e+00> : vector<8x32xf32>
      %111 = tpu.matmul %108, %110, %cst_104 {dimension_numbers = #tpu.dot_dimension_numbers<[1], [0], [0], [1], [0, 0, 1, 1], [], []>} : vector<8x8xbf16>, vector<8x32xbf16>, vector<8x32xf32> -> vector<8x32xf32>
      %112 = arith.addf %105, %111 : vector<8x32xf32>
      %113 = vector.extract_strided_slice %99 {offsets = [2, 0, 0], sizes = [1, 8, 8], strides = [1, 1, 1]} : vector<4x8x8xf32> to vector<1x8x8xf32>
      %114 = vector.shape_cast %113 : vector<1x8x8xf32> to vector<8x8xf32>
      %115 = arith.truncf %114 : vector<8x8xf32> to vector<8x8xbf16>
      %c2_105 = arith.constant 2 : index
      %c0_106 = arith.constant 0 : index
      %c0_107 = arith.constant 0 : index
      %116 = vector.load %arg9[%c2_105, %c0_106, %c0_107] : memref<4x8x32xbf16, #tpu.memory_space<vmem>>, vector<1x8x32xbf16>
      %117 = vector.shape_cast %116 : vector<1x8x32xbf16> to vector<8x32xbf16>
      %cst_108 = arith.constant dense<0.000000e+00> : vector<8x32xf32>
      %118 = tpu.matmul %115, %117, %cst_108 {dimension_numbers = #tpu.dot_dimension_numbers<[1], [0], [0], [1], [0, 0, 1, 1], [], []>} : vector<8x8xbf16>, vector<8x32xbf16>, vector<8x32xf32> -> vector<8x32xf32>
      %119 = arith.addf %112, %118 : vector<8x32xf32>
      %120 = vector.extract_strided_slice %99 {offsets = [3, 0, 0], sizes = [1, 8, 8], strides = [1, 1, 1]} : vector<4x8x8xf32> to vector<1x8x8xf32>
      %121 = vector.shape_cast %120 : vector<1x8x8xf32> to vector<8x8xf32>
      %122 = arith.truncf %121 : vector<8x8xf32> to vector<8x8xbf16>
      %c3_109 = arith.constant 3 : index
      %c0_110 = arith.constant 0 : index
      %c0_111 = arith.constant 0 : index
      %123 = vector.load %arg9[%c3_109, %c0_110, %c0_111] : memref<4x8x32xbf16, #tpu.memory_space<vmem>>, vector<1x8x32xbf16>
      %124 = vector.shape_cast %123 : vector<1x8x32xbf16> to vector<8x32xbf16>
      %cst_112 = arith.constant dense<0.000000e+00> : vector<8x32xf32>
      %125 = tpu.matmul %122, %124, %cst_112 {dimension_numbers = #tpu.dot_dimension_numbers<[1], [0], [0], [1], [0, 0, 1, 1], [], []>} : vector<8x8xbf16>, vector<8x32xbf16>, vector<8x32xf32> -> vector<8x32xf32>
      %126 = arith.addf %119, %125 : vector<8x32xf32>
      %c0_113 = arith.constant 0 : index
      %c0_114 = arith.constant 0 : index
      %127 = vector.load %arg10[%c0_113, %c0_114] : memref<1x32xf32, #tpu.memory_space<vmem>>, vector<1x32xf32>
      %128 = vector.broadcast %127 : vector<1x32xf32> to vector<8x32xf32>
      %129 = arith.addf %126, %128 : vector<8x32xf32>
      %c0_115 = arith.constant 0 : index
      %c0_116 = arith.constant 0 : index
      %c0_117 = arith.constant 0 : index
      %130 = vector.load %arg11[%c0_115, %c0_116, %c0_117] : memref<1x8x32xf32, #tpu.memory_space<vmem>>, vector<1x8x32xf32>
      %131 = vector.shape_cast %130 : vector<1x8x32xf32> to vector<8x32xf32>
      %132 = vector.shape_cast %129 : vector<8x32xf32> to vector<1x8x32xf32>
      tpu.vector_store %arg11[%c0_115, %c0_116, %c0_117], %132 {strides = array<i32>} : memref<1x8x32xf32, #tpu.memory_space<vmem>>, vector<1x8x32xf32>,
    } else {
    }
    return
  }
  func.func @transform_0(%arg0: i32, %arg1: i32, %arg2: i32) -> (i32, i32, i32) {
    %c0_i32 = arith.constant 0 : i32
    %c0_i32_0 = arith.constant 0 : i32
    return %arg0, %arg1, %c0_i32 : i32, i32, i32
  }
  func.func @transform_1(%arg0: i32, %arg1: i32, %arg2: i32) -> (i32, i32, i32) {
    %c0_i32 = arith.constant 0 : i32
    %c0_i32_0 = arith.constant 0 : i32
    return %arg0, %arg2, %c0_i32 : i32, i32, i32
  }
  func.func @transform_2(%arg0: i32, %arg1: i32, %arg2: i32) -> (i32, i32, i32) {
    %c0_i32 = arith.constant 0 : i32
    %c0_i32_0 = arith.constant 0 : i32
    return %arg0, %arg2, %c0_i32 : i32, i32, i32
  }
  func.func @transform_3(%arg0: i32, %arg1: i32, %arg2: i32) -> (i32, i32, i32) {
    %c0_i32 = arith.constant 0 : i32
    %c0_i32_0 = arith.constant 0 : i32
    %c0_i32_1 = arith.constant 0 : i32
    %c0_i32_2 = arith.constant 0 : i32
    return %c0_i32, %c0_i32_0, %c0_i32_1 : i32, i32, i32
  }
  func.func @transform_4(%arg0: i32, %arg1: i32, %arg2: i32) -> (i32, i32, i32) {
    %c0_i32 = arith.constant 0 : i32
    %c0_i32_0 = arith.constant 0 : i32
    %c0_i32_1 = arith.constant 0 : i32
    %c0_i32_2 = arith.constant 0 : i32
    return %c0_i32, %c0_i32_0, %c0_i32_1 : i32, i32, i32
  }
  func.func @transform_5(%arg0: i32, %arg1: i32, %arg2: i32) -> (i32, i32, i32) {
    %c0_i32 = arith.constant 0 : i32
    %c0_i32_0 = arith.constant 0 : i32
    %c0_i32_1 = arith.constant 0 : i32
    %c0_i32_2 = arith.constant 0 : i32
    return %c0_i32, %c0_i32_0, %c0_i32_1 : i32, i32, i32
  }
  func.func @transform_6(%arg0: i32, %arg1: i32, %arg2: i32) -> (i32, i32, i32) {
    %c0_i32 = arith.constant 0 : i32
    %c0_i32_0 = arith.constant 0 : i32
    %c0_i32_1 = arith.constant 0 : i32
    %c0_i32_2 = arith.constant 0 : i32
    return %c0_i32, %c0_i32_0, %c0_i32_1 : i32, i32, i32
  }
  func.func @transform_7(%arg0: i32, %arg1: i32, %arg2: i32) -> (i32, i32) {
    %c0_i32 = arith.constant 0 : i32
    %c0_i32_0 = arith.constant 0 : i32
    %c0_i32_1 = arith.constant 0 : i32
    return %c0_i32, %c0_i32_0 : i32, i32
  }
  func.func @transform_8(%arg0: i32, %arg1: i32, %arg2: i32) -> (i32, i32, i32) {
    %c0_i32 = arith.constant 0 : i32
    %c0_i32_0 = arith.constant 0 : i32
    return %arg0, %arg1, %c0_i32 : i32, i32, i32
  }
}

</mosaic_0001>

<llo_original>
// kernel: tpu_custom_call.1
$region0: #{tpu_custom_call.1}
  #allocation0 [shape = 'u32[]', space=smem, size = 0x4, offset = 0x4, fixed_abs, tag = 'smem constant byte address 0x4 - core index']
  #allocation1 [shape = 'u32[144,128]{1,0:T(1,128)}', space=vmem, size = 0x12000, scoped, tag = 'internal scratch']
  #allocation2 [shape = 'bf16[4,8,8]{2,1,0:T(8,128)(2,1)}', space=vmem, size = 0x2000, scoped, tag = 'scratch operand']
  #allocation3 [shape = 'bf16[4,8,8]{2,1,0:T(8,128)(2,1)}', space=vmem, size = 0x2000, scoped, tag = 'scratch operand']
  #allocation4 [shape = 'bf16[4,8,8]{2,1,0:T(8,128)(2,1)}', space=vmem, size = 0x2000, scoped, tag = 'scratch operand']
  #allocation5 [shape = 'f32[4,8,1]{2,1,0:T(8,128)}', space=vmem, size = 0x4000, scoped, tag = 'scratch operand']
  #allocation6 [shape = 'f32[4,8,1]{2,1,0:T(8,128)}', space=vmem, size = 0x4000, scoped, tag = 'scratch operand']
  #allocation7 [shape = 'f32[4,8,8]{2,1,0:T(8,128)}', space=vmem, size = 0x4000, scoped, tag = 'scratch operand']
  %s0 = inlined_call_operand.vmem [shape: f32[2,8,32], index: 0, kind: input, shape index: {}]
  %s1 = inlined_call_operand.vmem [shape: f32[2,8,32], index: 1, kind: input, shape index: {}]
  %s2 = inlined_call_operand.vmem [shape: f32[2,8,32], index: 2, kind: input, shape index: {}]
  %s3 = inlined_call_operand.vmem [shape: bf16[4,32,8], index: 3, kind: input, shape index: {}]
  %s4 = inlined_call_operand.vmem [shape: bf16[4,32,8], index: 4, kind: input, shape index: {}]
  %s5 = inlined_call_operand.vmem [shape: bf16[4,32,8], index: 5, kind: input, shape index: {}]
  %s6 = inlined_call_operand.vmem [shape: bf16[4,8,32], index: 6, kind: input, shape index: {}]
  %s7 = inlined_call_operand.vmem [shape: f32[1,32], index: 7, kind: input, shape index: {}]
  %s8 = inlined_call_operand.hbm [shape: f32[2,8,32], index: 8, kind: output, shape index: {}]
  %s9 = sld [smem:[#allocation0]]
  $region73: #{tpu_custom_call.1} parent=0
    _
  %s11 = ssub.s32 1, %s9
  %s12 = scalar_select 0, %s11, %s9
  $region1: #{tpu_custom_call.1} parent=0
    #allocation8 [shape = 'u8[8192]{0}', space=vmem, size = 0x2000, scoped, tag = 'output window, operand 0']
    #allocation9 [shape = 's32[2]{0}', space=sflag, size = 0x8, scoped, tag = 'scoped memory for tpu_custom_call.1']
    %13 = vsyncpa [#allocation9], 0
    %s14 = scalar_lea.sflag [#allocation9], 1
    %15 = vsyncpa %s14, 0
    loop: start=0, step=1, limit=4
    $region2: #{tpu_custom_call.1} parent=1 // loop_pre_header
      _
    $region3: #{tpu_custom_call.1} parent=1 // loop_header
      %s17 = sphi 0, %s21
      %p18 = scmp.ge.s32.totalorder %s17, 4
      %s24 = sphi 0, %s43
      %s25 = sphi 0, %s39
      %s26 = sphi 0, %s35
      %s27 = sphi 0, %s24
      %s28 = sphi 0, %s25
      %s29 = sphi 0, %s26
      %s30 = sphi 0, %s27
      %s31 = sphi 0, %s28
      %s32 = sphi 0, %s29
      %s48 = sphi 0, %s50
      %s51 = sphi 0, %s48
      %s52 = sphi 0, %s51
      %s68 = sphi 0, %s52
      %s76 = sphi 0, %s78
      %s79 = sphi 0, %s76
      %s80 = sphi 0, %s79
      %s96 = sphi 0, %s80
      %s104 = sphi 0, %s106
      %s107 = sphi 0, %s104
      %s108 = sphi 0, %s107
      %s124 = sphi 0, %s108
      %s128 = sphi 0, %s128
      %s130 = sphi 0, %s128
      %s131 = sphi 0, %s130
      %s145 = sphi 0, %s131
      %s149 = sphi 0, %s149
      %s151 = sphi 0, %s149
      %s152 = sphi 0, %s151
      %s166 = sphi 0, %s152
      %s170 = sphi 0, %s170
      %s172 = sphi 0, %s170
      %s173 = sphi 0, %s172
      %s187 = sphi 0, %s173
      %s191 = sphi 0, %s191
      %s193 = sphi 0, %s191
      %s194 = sphi 0, %s193
      %s208 = sphi 0, %s194
      %s212 = sphi 0, %s212
      %s214 = sphi 0, %s212
      %s215 = sphi 0, %s214
      %s229 = sphi 0, %s215
      %s237 = sphi 0, %s239
      %s240 = sphi 0, %s237
      %s241 = sphi 0, %s240
      %s257 = sphi 0, %s241
    $region4: #{tpu_custom_call.1} parent=1 // loop_header_branch
      %20 = sbr.rel (%p18) target = $region8
    $region5: #{tpu_custom_call.1} parent=1 // loop_body
      %s22 = ssub.s32 %s17, 1
      %s23 = ssub.s32 %s17, 2
      %s33 = sadd.s32 1, %s26
      %p34 = scmp.ge.s32.totalorder %s33, 1
      %s35 = scalar_select %p34, 0, %s33
      %s36 = sadd.s32 1, %s25
      %s37 = scalar_select %p34, %s36, %s25
      %p38 = scmp.ge.s32.totalorder %s37, 1
      %s39 = scalar_select %p38, 0, %s37
      %s40 = sadd.s32 1, %s24
      %s41 = scalar_select %p38, %s40, %s24
      %p42 = scmp.ge.s32.totalorder %s41, 2
      %s43 = scalar_select %p42, 0, %s41
      %s44 = ssub.s32 %s24, %s43
      %s45 = ssub.s32 %s25, %s39
      %s46 = sor.u32 %s44, %s45
      %p47 = scmp.eq.s32.totalorder %s46, 0
      %s49 = sadd.s32 %s48, 1
      %s50 = scalar_select %p47, %s48, %s49
      %p53 = pneg %p47
      %p54 = scmp.eq.s32.totalorder %s17, 1
      %p55 = por %p53, %p54
      %p56 = scmp.ne.s32.totalorder %s48, %s51
      %p57 = scmp.eq.s32.totalorder %s17, 0
      %p58 = por %p56, %p57
      %p59 = scmp.ne.s32.totalorder %s48, %s51
      %p60 = scmp.eq.s32.totalorder %s22, 1
      %p61 = por %p59, %p60
      %p62 = scmp.ne.s32.totalorder %s51, %s52
      %p63 = scmp.eq.s32.totalorder %s22, 0
      %p64 = por %p62, %p63
      %p65 = scmp.ne.s32.totalorder %s51, %s52
      %p66 = scmp.eq.s32.totalorder %s23, 1
      %p67 = por %p65, %p66
      %p69 = scmp.ne.s32.totalorder %s52, %s68
      %p70 = scmp.eq.s32.totalorder %s23, 0
      %p71 = por %p69, %p70
      %s72 = ssub.s32 %s24, %s43
      %s73 = ssub.s32 %s26, %s35
      %s74 = sor.u32 %s72, %s73
      %p75 = scmp.eq.s32.totalorder %s74, 0
      %s77 = sadd.s32 %s76, 1
      %s78 = scalar_select %p75, %s76, %s77
      %p81 = pneg %p75
      %p82 = scmp.eq.s32.totalorder %s17, 1
      %p83 = por %p81, %p82
      %p84 = scmp.ne.s32.totalorder %s76, %s79
      %p85 = scmp.eq.s32.totalorder %s17, 0
      %p86 = por %p84, %p85
      %p87 = scmp.ne.s32.totalorder %s76, %s79
      %p88 = scmp.eq.s32.totalorder %s22, 1
      %p89 = por %p87, %p88
      %p90 = scmp.ne.s32.totalorder %s79, %s80
      %p91 = scmp.eq.s32.totalorder %s22, 0
      %p92 = por %p90, %p91
      %p93 = scmp.ne.s32.totalorder %s79, %s80
      %p94 = scmp.eq.s32.totalorder %s23, 1
      %p95 = por %p93, %p94
      %p97 = scmp.ne.s32.totalorder %s80, %s96
      %p98 = scmp.eq.s32.totalorder %s23, 0
      %p99 = por %p97, %p98
      %s100 = ssub.s32 %s24, %s43
      %s101 = ssub.s32 %s26, %s35
      %s102 = sor.u32 %s100, %s101
      %p103 = scmp.eq.s32.totalorder %s102, 0
      %s105 = sadd.s32 %s104, 1
      %s106 = scalar_select %p103, %s104, %s105
      %p109 = pneg %p103
      %p110 = scmp.eq.s32.totalorder %s17, 1
      %p111 = por %p109, %p110
      %p112 = scmp.ne.s32.totalorder %s104, %s107
      %p113 = scmp.eq.s32.totalorder %s17, 0
      %p114 = por %p112, %p113
      %p115 = scmp.ne.s32.totalorder %s104, %s107
      %p116 = scmp.eq.s32.totalorder %s22, 1
      %p117 = por %p115, %p116
      %p118 = scmp.ne.s32.totalorder %s107, %s108
      %p119 = scmp.eq.s32.totalorder %s22, 0
      %p120 = por %p118, %p119
      %p121 = scmp.ne.s32.totalorder %s107, %s108
      %p122 = scmp.eq.s32.totalorder %s23, 1
      %p123 = por %p121, %p122
      %p125 = scmp.ne.s32.totalorder %s108, %s124
      %p126 = scmp.eq.s32.totalorder %s23, 0
      %p127 = por %p125, %p126
      %s129 = sadd.s32 %s128, 1
      %p132 = scmp.eq.s32.totalorder %s17, 1
      %p133 = scmp.ne.s32.totalorder %s128, %s130
      %p134 = scmp.eq.s32.totalorder %s17, 0
      %p135 = por %p133, %p134
      %p136 = scmp.ne.s32.totalorder %s128, %s130
      %p137 = scmp.eq.s32.totalorder %s22, 1
      %p138 = por %p136, %p137
      %p139 = scmp.ne.s32.totalorder %s130, %s131
      %p140 = scmp.eq.s32.totalorder %s22, 0
      %p141 = por %p139, %p140
      %p142 = scmp.ne.s32.totalorder %s130, %s131
      %p143 = scmp.eq.s32.totalorder %s23, 1
      %p144 = por %p142, %p143
      %p146 = scmp.ne.s32.totalorder %s131, %s145
      %p147 = scmp.eq.s32.totalorder %s23, 0
      %p148 = por %p146, %p147
      %s150 = sadd.s32 %s149, 1
      %p153 = scmp.eq.s32.totalorder %s17, 1
      %p154 = scmp.ne.s32.totalorder %s149, %s151
      %p155 = scmp.eq.s32.totalorder %s17, 0
      %p156 = por %p154, %p155
      %p157 = scmp.ne.s32.totalorder %s149, %s151
      %p158 = scmp.eq.s32.totalorder %s22, 1
      %p159 = por %p157, %p158
      %p160 = scmp.ne.s32.totalorder %s151, %s152
      %p161 = scmp.eq.s32.totalorder %s22, 0
      %p162 = por %p160, %p161
      %p163 = scmp.ne.s32.totalorder %s151, %s152
      %p164 = scmp.eq.s32.totalorder %s23, 1
      %p165 = por %p163, %p164
      %p167 = scmp.ne.s32.totalorder %s152, %s166
      %p168 = scmp.eq.s32.totalorder %s23, 0
      %p169 = por %p167, %p168
      %s171 = sadd.s32 %s170, 1
      %p174 = scmp.eq.s32.totalorder %s17, 1
      %p175 = scmp.ne.s32.totalorder %s170, %s172
      %p176 = scmp.eq.s32.totalorder %s17, 0
      %p177 = por %p175, %p176
      %p178 = scmp.ne.s32.totalorder %s170, %s172
      %p179 = scmp.eq.s32.totalorder %s22, 1
      %p180 = por %p178, %p179
      %p181 = scmp.ne.s32.totalorder %s172, %s173
      %p182 = scmp.eq.s32.totalorder %s22, 0
      %p183 = por %p181, %p182
      %p184 = scmp.ne.s32.totalorder %s172, %s173
      %p185 = scmp.eq.s32.totalorder %s23, 1
      %p186 = por %p184, %p185
      %p188 = scmp.ne.s32.totalorder %s173, %s187
      %p189 = scmp.eq.s32.totalorder %s23, 0
      %p190 = por %p188, %p189
      %s192 = sadd.s32 %s191, 1
      %p195 = scmp.eq.s32.totalorder %s17, 1
      %p196 = scmp.ne.s32.totalorder %s191, %s193
      %p197 = scmp.eq.s32.totalorder %s17, 0
      %p198 = por %p196, %p197
      %p199 = scmp.ne.s32.totalorder %s191, %s193
      %p200 = scmp.eq.s32.totalorder %s22, 1
      %p201 = por %p199, %p200
      %p202 = scmp.ne.s32.totalorder %s193, %s194
      %p203 = scmp.eq.s32.totalorder %s22, 0
      %p204 = por %p202, %p203
      %p205 = scmp.ne.s32.totalorder %s193, %s194
      %p206 = scmp.eq.s32.totalorder %s23, 1
      %p207 = por %p205, %p206
      %p209 = scmp.ne.s32.totalorder %s194, %s208
      %p210 = scmp.eq.s32.totalorder %s23, 0
      %p211 = por %p209, %p210
      %s213 = sadd.s32 %s212, 1
      %p216 = scmp.eq.s32.totalorder %s17, 1
      %p217 = scmp.ne.s32.totalorder %s212, %s214
      %p218 = scmp.eq.s32.totalorder %s17, 0
      %p219 = por %p217, %p218
      %p220 = scmp.ne.s32.totalorder %s212, %s214
      %p221 = scmp.eq.s32.totalorder %s22, 1
      %p222 = por %p220, %p221
      %p223 = scmp.ne.s32.totalorder %s214, %s215
      %p224 = scmp.eq.s32.totalorder %s22, 0
      %p225 = por %p223, %p224
      %p226 = scmp.ne.s32.totalorder %s214, %s215
      %p227 = scmp.eq.s32.totalorder %s23, 1
      %p228 = por %p226, %p227
      %p230 = scmp.ne.s32.totalorder %s215, %s229
      %p231 = scmp.eq.s32.totalorder %s23, 0
      %p232 = por %p230, %p231
      %s233 = ssub.s32 %s24, %s43
      %s234 = ssub.s32 %s25, %s39
      %s235 = sor.u32 %s233, %s234
      %p236 = scmp.eq.s32.totalorder %s235, 0
      %s238 = sadd.s32 %s237, 1
      %s239 = scalar_select %p236, %s237, %s238
      %p242 = pneg %p236
      %p243 = scmp.eq.s32.totalorder %s17, 1
      %p244 = por %p242, %p243
      %p245 = scmp.ne.s32.totalorder %s237, %s240
      %p246 = scmp.eq.s32.totalorder %s17, 0
      %p247 = por %p245, %p246
      %p248 = scmp.ne.s32.totalorder %s237, %s240
      %p249 = scmp.eq.s32.totalorder %s22, 1
      %p250 = por %p248, %p249
      %p251 = scmp.ne.s32.totalorder %s240, %s241
      %p252 = scmp.eq.s32.totalorder %s22, 0
      %p253 = por %p251, %p252
      %p254 = scmp.ne.s32.totalorder %s240, %s241
      %p255 = scmp.eq.s32.totalorder %s23, 1
      %p256 = por %p254, %p255
      %p258 = scmp.ne.s32.totalorder %s241, %s257
      %p259 = scmp.eq.s32.totalorder %s23, 0
      %p260 = por %p258, %p259
      %p261 = scmp.le.s32.totalorder 1, %s17
      %p262 = scmp.lt.s32.totalorder %s17, 3
      %p263 = pnand %p261, %p262
      %p264 = pneg %p263
      // Predicated region
      $region9: #{tpu_custom_call.1} parent=5 // pred_check
        _
      $region10: #{tpu_custom_call.1} parent=5 // pred_check_branch
        %266 = sbr.rel (%p263) target = $region12
      $region11: #{tpu_custom_call.1} parent=5 // pred_region
        %s267 = ssub.s32 %s17, 1
        // Predicated region
        $region13: #{tpu_custom_call.1} parent=11 // pred_check
          %p268 = pneg %p141
        $region14: #{tpu_custom_call.1} parent=11 // pred_check_branch
          %270 = sbr.rel (%p268) target = $region16
        $region15: #{tpu_custom_call.1} parent=11 // pred_region
          _
        $region16: #{tpu_custom_call.1} parent=11 // pred_fallthru
          _
        // Predicated region
        $region17: #{tpu_custom_call.1} parent=11 // pred_check
          %p271 = pneg %p162
        $region18: #{tpu_custom_call.1} parent=11 // pred_check_branch
          %273 = sbr.rel (%p271) target = $region20
        $region19: #{tpu_custom_call.1} parent=11 // pred_region
          _
        $region20: #{tpu_custom_call.1} parent=11 // pred_fallthru
          _
        // Predicated region
        $region21: #{tpu_custom_call.1} parent=11 // pred_check
          %p274 = pneg %p183
        $region22: #{tpu_custom_call.1} parent=11 // pred_check_branch
          %276 = sbr.rel (%p274) target = $region24
        $region23: #{tpu_custom_call.1} parent=11 // pred_region
          _
        $region24: #{tpu_custom_call.1} parent=11 // pred_fallthru
          _
        // Predicated region
        $region25: #{tpu_custom_call.1} parent=11 // pred_check
          %p277 = pneg %p204
        $region26: #{tpu_custom_call.1} parent=11 // pred_check_branch
          %279 = sbr.rel (%p277) target = $region28
        $region27: #{tpu_custom_call.1} parent=11 // pred_region
          _
        $region28: #{tpu_custom_call.1} parent=11 // pred_fallthru
          _
        // Predicated region
        $region29: #{tpu_custom_call.1} parent=11 // pred_check
          %p280 = pneg %p225
        $region30: #{tpu_custom_call.1} parent=11 // pred_check_branch
          %282 = sbr.rel (%p280) target = $region32
        $region31: #{tpu_custom_call.1} parent=11 // pred_region
          _
        $region32: #{tpu_custom_call.1} parent=11 // pred_fallthru
          _
      $region12: #{tpu_custom_call.1} parent=5 // pred_fallthru
        _
      %p283 = scmp.lt.s32.totalorder %s17, 2
      // Predicated region
      $region33: #{tpu_custom_call.1} parent=5 // pred_check
        %p284 = pneg %p283
      $region34: #{tpu_custom_call.1} parent=5 // pred_check_branch
        %286 = sbr.rel (%p284) target = $region36
      $region35: #{tpu_custom_call.1} parent=5 // pred_region
        // Predicated region
        $region37: #{tpu_custom_call.1} parent=35 // pred_check
          %p287 = pneg %p58
        $region38: #{tpu_custom_call.1} parent=35 // pred_check_branch
          %289 = sbr.rel (%p287) target = $region40
        $region39: #{tpu_custom_call.1} parent=35 // pred_region
          %p290 = scmp.lt.s32.totalorder %s24, 1
          %s291 = scalar_select %p290, %s24, 1
          %p292 = scmp.lt.s32.totalorder %s25, 0
          %s293 = scalar_select %p292, %s25, 0
          %s294 = sadd.s32 %s293, %s291
          %s295 = smul.addr %s294, 8
          %s296 = scalar_lea.vmem %s0, %s295
        $region40: #{tpu_custom_call.1} parent=35 // pred_fallthru
          _
        // Predicated region
        $region41: #{tpu_custom_call.1} parent=35 // pred_check
          %p297 = pneg %p86
        $region42: #{tpu_custom_call.1} parent=35 // pred_check_branch
          %299 = sbr.rel (%p297) target = $region44
        $region43: #{tpu_custom_call.1} parent=35 // pred_region
          %p300 = scmp.lt.s32.totalorder %s24, 1
          %s301 = scalar_select %p300, %s24, 1
          %p302 = scmp.lt.s32.totalorder %s26, 0
          %s303 = scalar_select %p302, %s26, 0
          %s304 = sadd.s32 %s303, %s301
          %s305 = smul.addr %s304, 8
          %s306 = scalar_lea.vmem %s1, %s305
        $region44: #{tpu_custom_call.1} parent=35 // pred_fallthru
          _
        // Predicated region
        $region45: #{tpu_custom_call.1} parent=35 // pred_check
          %p307 = pneg %p114
        $region46: #{tpu_custom_call.1} parent=35 // pred_check_branch
          %309 = sbr.rel (%p307) target = $region48
        $region47: #{tpu_custom_call.1} parent=35 // pred_region
          %p310 = scmp.lt.s32.totalorder %s24, 1
          %s311 = scalar_select %p310, %s24, 1
          %p312 = scmp.lt.s32.totalorder %s26, 0
          %s313 = scalar_select %p312, %s26, 0
          %s314 = sadd.s32 %s313, %s311
          %s315 = smul.addr %s314, 8
          %s316 = scalar_lea.vmem %s2, %s315
        $region48: #{tpu_custom_call.1} parent=35 // pred_fallthru
          _
      $region36: #{tpu_custom_call.1} parent=5 // pred_fallthru
        _
      %p317 = scmp.le.s32.totalorder 1, %s17
      %p318 = scmp.lt.s32.totalorder %s17, 3
      %p319 = pnand %p317, %p318
      %p320 = pneg %p319
      // Predicated region
      $region49: #{tpu_custom_call.1} parent=5 // pred_check
        _
      $region50: #{tpu_custom_call.1} parent=5 // pred_check_branch
        %322 = sbr.rel (%p319) target = $region52
      $region51: #{tpu_custom_call.1} parent=5 // pred_region
        %s323 = ssub.s32 %s17, 1
        %p324 = scmp.lt.s32.totalorder %s27, 1
        %s325 = scalar_select %p324, %s27, 1
        %p326 = scmp.lt.s32.totalorder %s28, 0
        %s327 = scalar_select %p326, %s28, 0
        %s328 = sadd.s32 %s327, %s325
        %s329 = smul.addr %s328, 8
        %s330 = scalar_lea.vmem %s0, %s329
        %p331 = pneg %p64
        %p332 = pneg %p61
        %p333 = scmp.lt.s32.totalorder %s27, 1
        %s334 = scalar_select %p333, %s27, 1
        %p335 = scmp.lt.s32.totalorder %s29, 0
        %s336 = scalar_select %p335, %s29, 0
        %s337 = sadd.s32 %s336, %s334
        %s338 = smul.addr %s337, 8
        %s339 = scalar_lea.vmem %s1, %s338
        %p340 = pneg %p92
        %p341 = pneg %p89
        %p342 = scmp.lt.s32.totalorder %s27, 1
        %s343 = scalar_select %p342, %s27, 1
        %p344 = scmp.lt.s32.totalorder %s29, 0
        %s345 = scalar_select %p344, %s29, 0
        %s346 = sadd.s32 %s345, %s343
        %s347 = smul.addr %s346, 8
        %s348 = scalar_lea.vmem %s2, %s347
        %p349 = pneg %p120
        %p350 = pneg %p117
        %p351 = pneg %p141
        %p352 = pneg %p138
        %p353 = pneg %p162
        %p354 = pneg %p159
        %p355 = pneg %p183
        %p356 = pneg %p180
        %p357 = pneg %p204
        %p358 = pneg %p201
        %p359 = pneg %p225
        %p360 = pneg %p222
        %p361 = pneg %p253
        %p362 = pneg %p250
        %s363 = sand.u32 %s240, 1
        %s364 = scalar_lea.sflag [#allocation9], %s363
        %s365 = sand.u32 %s240, 1
        %s366 = smul.addr %s365, 8
        %s367 = scalar_lea.vmem [#allocation8], %s366
        %p368 = scmp.lt.s32.totalorder %s27, 1
        %s369 = scalar_select %p368, %s27, 1
        %p370 = scmp.lt.s32.totalorder %s28, 0
        %s371 = scalar_select %p370, %s28, 0
        %s372 = sadd.s32 %s371, %s369
        %s373 = smul.addr %s372, 8
        %s374 = scalar_lea.vmem %s0, %s373
        %p375 = scmp.lt.s32.totalorder %s27, 1
        %s376 = scalar_select %p375, %s27, 1
        %p377 = scmp.lt.s32.totalorder %s29, 0
        %s378 = scalar_select %p377, %s29, 0
        %s379 = sadd.s32 %s378, %s376
        %s380 = smul.addr %s379, 8
        %s381 = scalar_lea.vmem %s1, %s380
        %p382 = scmp.lt.s32.totalorder %s27, 1
        %s383 = scalar_select %p382, %s27, 1
        %p384 = scmp.lt.s32.totalorder %s29, 0
        %s385 = scalar_select %p384, %s29, 0
        %s386 = sadd.s32 %s385, %s383
        %s387 = smul.addr %s386, 8
        %s388 = scalar_lea.vmem %s2, %s387
        %p390 = scmp.eq.s32.totalorder %s29, 0
        // Predicated region
        $region53: #{tpu_custom_call.1} parent=51 // pred_check
          %p391 = pneg %p390
        $region54: #{tpu_custom_call.1} parent=51 // pred_check_branch
          %393 = sbr.rel (%p391) target = $region56
        $region55: #{tpu_custom_call.1} parent=51 // pred_region
          %v394 = vld [vmem:[%s374] sm:$0xff]
          %v395 = vpack.c.bf16 %v394, %v394
          %v396 = vld [vmem:[%s3] sm:$0xf]
          %v397 = vld [vmem:[%s3 + $0x4] sm:$0xf]
          %v398 = vld [vmem:[%s3 + $0x8] sm:$0xf]
          %v399 = vld [vmem:[%s3 + $0xc] sm:$0xf]
          %v404 = vunpack.c.l.b16 %v396
          %v405 = vunpack.c.l.b16 %v397
          %v406 = vunpack.c.l.b16 %v398
          %v407 = vunpack.c.l.b16 %v399
          %v408 = vpack.c.b16 %v405, %v404
          %v409 = vpack.c.b16 %v407, %v406
          %vm412 = vcmask 261120
          %v414 = vsel %vm412, %v395, 0
          %416 = vmatprep.subr.bf16.mxu0 0
          %417 = vmatpush1.bf16.msra.mxu0 0
          %418 = vmatprep.subr.bf16.mxu0 0
          %419 = vmatpush1.bf16.msra.mxu0 0
          %420 = vmatprep.subr.bf16.mxu0 0
          %421 = vmatpush1.bf16.msra.mxu0 0
          %422 = vmatprep.subr.bf16.mxu0 0
          %423 = vmatpush1.bf16.msra.mxu0 0
          %424 = vmatprep.subr.bf16.mxu0 0
          %425 = vmatpush1.bf16.msra.mxu0 0
          %426 = vmatprep.subr.bf16.mxu0 0
          %427 = vmatpush1.bf16.msra.mxu0 0
          %428 = vmatprep.subr.bf16.mxu0 0
          %429 = vmatpush1.bf16.msra.mxu0 %v409
          %430 = vmatprep.subr.bf16.mxu0 0
          %431 = vmatpush1.bf16.msra.mxu0 %v408
          %432 = vmatprep.subr.bf16.mxu0 0
          %433 = vmatpush2.bf16.msra.mxu0 0
          %434 = vmatprep.subr.bf16.mxu0 0
          %435 = vmatpush2.bf16.msra.mxu0 0
          %436 = vmatprep.subr.bf16.mxu0 0
          %437 = vmatpush2.bf16.msra.mxu0 0
          %438 = vmatprep.subr.bf16.mxu0 0
          %439 = vmatpush2.bf16.msra.mxu0 0
          %440 = vmatprep.subr.bf16.mxu0 0
          %441 = vmatpush2.bf16.msra.mxu0 0
          %442 = vmatprep.subr.bf16.mxu0 0
          %443 = vmatpush2.bf16.msra.mxu0 0
          %444 = vmatprep.subr.bf16.mxu0 0
          %445 = vmatpush2.bf16.msra.mxu0 0
          %446 = vmatprep.subr.bf16.mxu0 0
          %447 = vmatpush2.bf16.msra.mxu0 0
          %448 = vmatprep.mubr.bf16.mxu0 0
          %449 = vmatmul.mubr.bf16.gmra.mxu0 %v414
          %v450 = vpop.f32.mrf.mxu0
          %v451 = vadd.f32 0.0, %v450
          %v452 = vpop.f32.mrf.mxu0
          %v453 = vpop.f32.mrf.mxu0
          %v454 = vpop.f32.mrf.mxu0
          %455 = vdwg.mxu0
          %v456 = vpack.c.bf16 %v451, %v451
          %vm457 = vcmask 60416
          %458 = vst.msk [vmem:[#allocation2] sm:$0xf] %vm457, %v456
          %s459 = scalar_lea.vmem %s3, 16
          %v460 = vld [vmem:[%s459] sm:$0xf]
          %v461 = vld [vmem:[%s459 + $0x4] sm:$0xf]
          %v462 = vld [vmem:[%s459 + $0x8] sm:$0xf]
          %v463 = vld [vmem:[%s459 + $0xc] sm:$0xf]
          %v468 = vunpack.c.l.b16 %v460
          %v469 = vunpack.c.l.b16 %v461
          %v470 = vunpack.c.l.b16 %v462
          %v471 = vunpack.c.l.b16 %v463
          %v472 = vpack.c.b16 %v469, %v468
          %v473 = vpack.c.b16 %v471, %v470
          %476 = vmatprep.subr.bf16.mxu0 0
          %477 = vmatpush1.bf16.msra.mxu0 0
          %478 = vmatprep.subr.bf16.mxu0 0
          %479 = vmatpush1.bf16.msra.mxu0 0
          %480 = vmatprep.subr.bf16.mxu0 0
          %481 = vmatpush1.bf16.msra.mxu0 0
          %482 = vmatprep.subr.bf16.mxu0 0
          %483 = vmatpush1.bf16.msra.mxu0 0
          %484 = vmatprep.subr.bf16.mxu0 0
          %485 = vmatpush1.bf16.msra.mxu0 0
          %486 = vmatprep.subr.bf16.mxu0 0
          %487 = vmatpush1.bf16.msra.mxu0 0
          %488 = vmatprep.subr.bf16.mxu0 0
          %489 = vmatpush1.bf16.msra.mxu0 %v473
          %490 = vmatprep.subr.bf16.mxu0 0
          %491 = vmatpush1.bf16.msra.mxu0 %v472
          %492 = vmatprep.subr.bf16.mxu0 0
          %493 = vmatpush2.bf16.msra.mxu0 0
          %494 = vmatprep.subr.bf16.mxu0 0
          %495 = vmatpush2.bf16.msra.mxu0 0
          %496 = vmatprep.subr.bf16.mxu0 0
          %497 = vmatpush2.bf16.msra.mxu0 0
          %498 = vmatprep.subr.bf16.mxu0 0
          %499 = vmatpush2.bf16.msra.mxu0 0
          %500 = vmatprep.subr.bf16.mxu0 0
          %501 = vmatpush2.bf16.msra.mxu0 0
          %502 = vmatprep.subr.bf16.mxu0 0
          %503 = vmatpush2.bf16.msra.mxu0 0
          %504 = vmatprep.subr.bf16.mxu0 0
          %505 = vmatpush2.bf16.msra.mxu0 0
          %506 = vmatprep.subr.bf16.mxu0 0
          %507 = vmatpush2.bf16.msra.mxu0 0
          %508 = vmatprep.mubr.bf16.mxu0 0
          %509 = vmatmul.mubr.bf16.gmra.mxu0 %v414
          %v510 = vpop.f32.mrf.mxu0
          %v511 = vadd.f32 0.0, %v510
          %v512 = vpop.f32.mrf.mxu0
          %v513 = vpop.f32.mrf.mxu0
          %v514 = vpop.f32.mrf.mxu0
          %515 = vdwg.mxu0
          %v516 = vpack.c.bf16 %v511, %v511
          %s517 = scalar_lea.vmem [#allocation2], 4
          %518 = vst.msk [vmem:[%s517] sm:$0xf] %vm457, %v516
          %s519 = scalar_lea.vmem %s3, 32
          %v520 = vld [vmem:[%s519] sm:$0xf]
          %v521 = vld [vmem:[%s519 + $0x4] sm:$0xf]
          %v522 = vld [vmem:[%s519 + $0x8] sm:$0xf]
          %v523 = vld [vmem:[%s519 + $0xc] sm:$0xf]
          %v528 = vunpack.c.l.b16 %v520
          %v529 = vunpack.c.l.b16 %v521
          %v530 = vunpack.c.l.b16 %v522
          %v531 = vunpack.c.l.b16 %v523
          %v532 = vpack.c.b16 %v529, %v528
          %v533 = vpack.c.b16 %v531, %v530
          %536 = vmatprep.subr.bf16.mxu0 0
          %537 = vmatpush1.bf16.msra.mxu0 0
          %538 = vmatprep.subr.bf16.mxu0 0
          %539 = vmatpush1.bf16.msra.mxu0 0
          %540 = vmatprep.subr.bf16.mxu0 0
          %541 = vmatpush1.bf16.msra.mxu0 0
          %542 = vmatprep.subr.bf16.mxu0 0
          %543 = vmatpush1.bf16.msra.mxu0 0
          %544 = vmatprep.subr.bf16.mxu0 0
          %545 = vmatpush1.bf16.msra.mxu0 0
          %546 = vmatprep.subr.bf16.mxu0 0
          %547 = vmatpush1.bf16.msra.mxu0 0
          %548 = vmatprep.subr.bf16.mxu0 0
          %549 = vmatpush1.bf16.msra.mxu0 %v533
          %550 = vmatprep.subr.bf16.mxu0 0
          %551 = vmatpush1.bf16.msra.mxu0 %v532
          %552 = vmatprep.subr.bf16.mxu0 0
          %553 = vmatpush2.bf16.msra.mxu0 0
          %554 = vmatprep.subr.bf16.mxu0 0
          %555 = vmatpush2.bf16.msra.mxu0 0
          %556 = vmatprep.subr.bf16.mxu0 0
          %557 = vmatpush2.bf16.msra.mxu0 0
          %558 = vmatprep.subr.bf16.mxu0 0
          %559 = vmatpush2.bf16.msra.mxu0 0
          %560 = vmatprep.subr.bf16.mxu0 0
          %561 = vmatpush2.bf16.msra.mxu0 0
          %562 = vmatprep.subr.bf16.mxu0 0
          %563 = vmatpush2.bf16.msra.mxu0 0
          %564 = vmatprep.subr.bf16.mxu0 0
          %565 = vmatpush2.bf16.msra.mxu0 0
          %566 = vmatprep.subr.bf16.mxu0 0
          %567 = vmatpush2.bf16.msra.mxu0 0
          %568 = vmatprep.mubr.bf16.mxu0 0
          %569 = vmatmul.mubr.bf16.gmra.mxu0 %v414
          %v570 = vpop.f32.mrf.mxu0
          %v571 = vadd.f32 0.0, %v570
          %v572 = vpop.f32.mrf.mxu0
          %v573 = vpop.f32.mrf.mxu0
          %v574 = vpop.f32.mrf.mxu0
          %575 = vdwg.mxu0
          %v576 = vpack.c.bf16 %v571, %v571
          %s577 = scalar_lea.vmem [#allocation2], 8
          %578 = vst.msk [vmem:[%s577] sm:$0xf] %vm457, %v576
          %s579 = scalar_lea.vmem %s3, 48
          %v580 = vld [vmem:[%s579] sm:$0xf]
          %v581 = vld [vmem:[%s579 + $0x4] sm:$0xf]
          %v582 = vld [vmem:[%s579 + $0x8] sm:$0xf]
          %v583 = vld [vmem:[%s579 + $0xc] sm:$0xf]
          %v588 = vunpack.c.l.b16 %v580
          %v589 = vunpack.c.l.b16 %v581
          %v590 = vunpack.c.l.b16 %v582
          %v591 = vunpack.c.l.b16 %v583
          %v592 = vpack.c.b16 %v589, %v588
          %v593 = vpack.c.b16 %v591, %v590
          %596 = vmatprep.subr.bf16.mxu0 0
          %597 = vmatpush1.bf16.msra.mxu0 0
          %598 = vmatprep.subr.bf16.mxu0 0
          %599 = vmatpush1.bf16.msra.mxu0 0
          %600 = vmatprep.subr.bf16.mxu0 0
          %601 = vmatpush1.bf16.msra.mxu0 0
          %602 = vmatprep.subr.bf16.mxu0 0
          %603 = vmatpush1.bf16.msra.mxu0 0
          %604 = vmatprep.subr.bf16.mxu0 0
          %605 = vmatpush1.bf16.msra.mxu0 0
          %606 = vmatprep.subr.bf16.mxu0 0
          %607 = vmatpush1.bf16.msra.mxu0 0
          %608 = vmatprep.subr.bf16.mxu0 0
          %609 = vmatpush1.bf16.msra.mxu0 %v593
          %610 = vmatprep.subr.bf16.mxu0 0
          %611 = vmatpush1.bf16.msra.mxu0 %v592
          %612 = vmatprep.subr.bf16.mxu0 0
          %613 = vmatpush2.bf16.msra.mxu0 0
          %614 = vmatprep.subr.bf16.mxu0 0
          %615 = vmatpush2.bf16.msra.mxu0 0
          %616 = vmatprep.subr.bf16.mxu0 0
          %617 = vmatpush2.bf16.msra.mxu0 0
          %618 = vmatprep.subr.bf16.mxu0 0
          %619 = vmatpush2.bf16.msra.mxu0 0
          %620 = vmatprep.subr.bf16.mxu0 0
          %621 = vmatpush2.bf16.msra.mxu0 0
          %622 = vmatprep.subr.bf16.mxu0 0
          %623 = vmatpush2.bf16.msra.mxu0 0
          %624 = vmatprep.subr.bf16.mxu0 0
          %625 = vmatpush2.bf16.msra.mxu0 0
          %626 = vmatprep.subr.bf16.mxu0 0
          %627 = vmatpush2.bf16.msra.mxu0 0
          %628 = vmatprep.mubr.bf16.mxu0 0
          %629 = vmatmul.mubr.bf16.gmra.mxu0 %v414
          %v630 = vpop.f32.mrf.mxu0
          %v631 = vadd.f32 0.0, %v630
          %v632 = vpop.f32.mrf.mxu0
          %v633 = vpop.f32.mrf.mxu0
          %v634 = vpop.f32.mrf.mxu0
          %635 = vdwg.mxu0
          %v636 = vpack.c.bf16 %v631, %v631
          %s637 = scalar_lea.vmem [#allocation2], 12
          %638 = vst.msk [vmem:[%s637] sm:$0xf] %vm457, %v636
          %vm639 = vcmask 7168
          %640 = vst.msk [vmem:[#allocation5] sm:$0xff] %vm639, -inf
          %641 = vst.msk [vmem:[#allocation5 + $0x8] sm:$0xff] %vm639, -inf
          %642 = vst.msk [vmem:[#allocation5 + $0x10] sm:$0xff] %vm639, -inf
          %643 = vst.msk [vmem:[#allocation5 + $0x18] sm:$0xff] %vm639, -inf
          %644 = vst.msk [vmem:[#allocation6] sm:$0xff] %vm639, 0.0
          %645 = vst.msk [vmem:[#allocation6 + $0x8] sm:$0xff] %vm639, 0.0
          %646 = vst.msk [vmem:[#allocation6 + $0x10] sm:$0xff] %vm639, 0.0
          %647 = vst.msk [vmem:[#allocation6 + $0x18] sm:$0xff] %vm639, 0.0
          %vm648 = vcmask 64512
          %649 = vst.msk [vmem:[#allocation7] sm:$0xff] %vm648, 0.0
          %650 = vst.msk [vmem:[#allocation7 + $0x8] sm:$0xff] %vm648, 0.0
          %651 = vst.msk [vmem:[#allocation7 + $0x10] sm:$0xff] %vm648, 0.0
          %652 = vst.msk [vmem:[#allocation7 + $0x18] sm:$0xff] %vm648, 0.0
        $region56: #{tpu_custom_call.1} parent=51 // pred_fallthru
          _
        %v653 = vld [vmem:[%s381] sm:$0xff]
        %v654 = vpack.c.bf16 %v653, %v653
        %v655 = vld [vmem:[%s388] sm:$0xff]
        %v656 = vpack.c.bf16 %v655, %v655
        %v657 = vld [vmem:[%s4] sm:$0xf]
        %v658 = vld [vmem:[%s4 + $0x4] sm:$0xf]
        %v659 = vld [vmem:[%s4 + $0x8] sm:$0xf]
        %v660 = vld [vmem:[%s4 + $0xc] sm:$0xf]
        %v665 = vunpack.c.l.b16 %v657
        %v666 = vunpack.c.l.b16 %v658
        %v667 = vunpack.c.l.b16 %v659
        %v668 = vunpack.c.l.b16 %v660
        %v669 = vpack.c.b16 %v666, %v665
        %v670 = vpack.c.b16 %v668, %v667
        %vm673 = vcmask 261120
        %v675 = vsel %vm673, %v654, 0
        %677 = vmatprep.subr.bf16.mxu0 0
        %678 = vmatpush1.bf16.msra.mxu0 0
        %679 = vmatprep.subr.bf16.mxu0 0
        %680 = vmatpush1.bf16.msra.mxu0 0
        %681 = vmatprep.subr.bf16.mxu0 0
        %682 = vmatpush1.bf16.msra.mxu0 0
        %683 = vmatprep.subr.bf16.mxu0 0
        %684 = vmatpush1.bf16.msra.mxu0 0
        %685 = vmatprep.subr.bf16.mxu0 0
        %686 = vmatpush1.bf16.msra.mxu0 0
        %687 = vmatprep.subr.bf16.mxu0 0
        %688 = vmatpush1.bf16.msra.mxu0 0
        %689 = vmatprep.subr.bf16.mxu0 0
        %690 = vmatpush1.bf16.msra.mxu0 %v670
        %691 = vmatprep.subr.bf16.mxu0 0
        %692 = vmatpush1.bf16.msra.mxu0 %v669
        %693 = vmatprep.subr.bf16.mxu0 0
        %694 = vmatpush2.bf16.msra.mxu0 0
        %695 = vmatprep.subr.bf16.mxu0 0
        %696 = vmatpush2.bf16.msra.mxu0 0
        %697 = vmatprep.subr.bf16.mxu0 0
        %698 = vmatpush2.bf16.msra.mxu0 0
        %699 = vmatprep.subr.bf16.mxu0 0
        %700 = vmatpush2.bf16.msra.mxu0 0
        %701 = vmatprep.subr.bf16.mxu0 0
        %702 = vmatpush2.bf16.msra.mxu0 0
        %703 = vmatprep.subr.bf16.mxu0 0
        %704 = vmatpush2.bf16.msra.mxu0 0
        %705 = vmatprep.subr.bf16.mxu0 0
        %706 = vmatpush2.bf16.msra.mxu0 0
        %707 = vmatprep.subr.bf16.mxu0 0
        %708 = vmatpush2.bf16.msra.mxu0 0
        %709 = vmatprep.mubr.bf16.mxu0 0
        %710 = vmatmul.mubr.bf16.gmra.mxu0 %v675
        %v711 = vpop.f32.mrf.mxu0
        %v712 = vadd.f32 0.0, %v711
        %v713 = vpop.f32.mrf.mxu0
        %v714 = vpop.f32.mrf.mxu0
        %v715 = vpop.f32.mrf.mxu0
        %716 = vdwg.mxu0
        %v717 = vpack.c.bf16 %v712, %v712
        %vm718 = vcmask 60416
        %719 = vst.msk [vmem:[#allocation3] sm:$0xf] %vm718, %v717
        %v720 = vld [vmem:[%s5] sm:$0xf]
        %v721 = vld [vmem:[%s5 + $0x4] sm:$0xf]
        %v722 = vld [vmem:[%s5 + $0x8] sm:$0xf]
        %v723 = vld [vmem:[%s5 + $0xc] sm:$0xf]
        %v728 = vunpack.c.l.b16 %v720
        %v729 = vunpack.c.l.b16 %v721
        %v730 = vunpack.c.l.b16 %v722
        %v731 = vunpack.c.l.b16 %v723
        %v732 = vpack.c.b16 %v729, %v728
        %v733 = vpack.c.b16 %v731, %v730
        %v737 = vsel %vm673, %v656, 0
        %739 = vmatprep.subr.bf16.mxu0 0
        %740 = vmatpush1.bf16.msra.mxu0 0
        %741 = vmatprep.subr.bf16.mxu0 0
        %742 = vmatpush1.bf16.msra.mxu0 0
        %743 = vmatprep.subr.bf16.mxu0 0
        %744 = vmatpush1.bf16.msra.mxu0 0
        %745 = vmatprep.subr.bf16.mxu0 0
        %746 = vmatpush1.bf16.msra.mxu0 0
        %747 = vmatprep.subr.bf16.mxu0 0
        %748 = vmatpush1.bf16.msra.mxu0 0
        %749 = vmatprep.subr.bf16.mxu0 0
        %750 = vmatpush1.bf16.msra.mxu0 0
        %751 = vmatprep.subr.bf16.mxu0 0
        %752 = vmatpush1.bf16.msra.mxu0 %v733
        %753 = vmatprep.subr.bf16.mxu0 0
        %754 = vmatpush1.bf16.msra.mxu0 %v732
        %755 = vmatprep.subr.bf16.mxu0 0
        %756 = vmatpush2.bf16.msra.mxu0 0
        %757 = vmatprep.subr.bf16.mxu0 0
        %758 = vmatpush2.bf16.msra.mxu0 0
        %759 = vmatprep.subr.bf16.mxu0 0
        %760 = vmatpush2.bf16.msra.mxu0 0
        %761 = vmatprep.subr.bf16.mxu0 0
        %762 = vmatpush2.bf16.msra.mxu0 0
        %763 = vmatprep.subr.bf16.mxu0 0
        %764 = vmatpush2.bf16.msra.mxu0 0
        %765 = vmatprep.subr.bf16.mxu0 0
        %766 = vmatpush2.bf16.msra.mxu0 0
        %767 = vmatprep.subr.bf16.mxu0 0
        %768 = vmatpush2.bf16.msra.mxu0 0
        %769 = vmatprep.subr.bf16.mxu0 0
        %770 = vmatpush2.bf16.msra.mxu0 0
        %771 = vmatprep.mubr.bf16.mxu0 0
        %772 = vmatmul.mubr.bf16.gmra.mxu0 %v737
        %v773 = vpop.f32.mrf.mxu0
        %v774 = vadd.f32 0.0, %v773
        %v775 = vpop.f32.mrf.mxu0
        %v776 = vpop.f32.mrf.mxu0
        %v777 = vpop.f32.mrf.mxu0
        %778 = vdwg.mxu0
        %v779 = vpack.c.bf16 %v774, %v774
        %780 = vst.msk [vmem:[#allocation4] sm:$0xf] %vm718, %v779
        %s781 = scalar_lea.vmem %s4, 16
        %v782 = vld [vmem:[%s781] sm:$0xf]
        %v783 = vld [vmem:[%s781 + $0x4] sm:$0xf]
        %v784 = vld [vmem:[%s781 + $0x8] sm:$0xf]
        %v785 = vld [vmem:[%s781 + $0xc] sm:$0xf]
        %v790 = vunpack.c.l.b16 %v782
        %v791 = vunpack.c.l.b16 %v783
        %v792 = vunpack.c.l.b16 %v784
        %v793 = vunpack.c.l.b16 %v785
        %v794 = vpack.c.b16 %v791, %v790
        %v795 = vpack.c.b16 %v793, %v792
        %798 = vmatprep.subr.bf16.mxu0 0
        %799 = vmatpush1.bf16.msra.mxu0 0
        %800 = vmatprep.subr.bf16.mxu0 0
        %801 = vmatpush1.bf16.msra.mxu0 0
        %802 = vmatprep.subr.bf16.mxu0 0
        %803 = vmatpush1.bf16.msra.mxu0 0
        %804 = vmatprep.subr.bf16.mxu0 0
        %805 = vmatpush1.bf16.msra.mxu0 0
        %806 = vmatprep.subr.bf16.mxu0 0
        %807 = vmatpush1.bf16.msra.mxu0 0
        %808 = vmatprep.subr.bf16.mxu0 0
        %809 = vmatpush1.bf16.msra.mxu0 0
        %810 = vmatprep.subr.bf16.mxu0 0
        %811 = vmatpush1.bf16.msra.mxu0 %v795
        %812 = vmatprep.subr.bf16.mxu0 0
        %813 = vmatpush1.bf16.msra.mxu0 %v794
        %814 = vmatprep.subr.bf16.mxu0 0
        %815 = vmatpush2.bf16.msra.mxu0 0
        %816 = vmatprep.subr.bf16.mxu0 0
        %817 = vmatpush2.bf16.msra.mxu0 0
        %818 = vmatprep.subr.bf16.mxu0 0
        %819 = vmatpush2.bf16.msra.mxu0 0
        %820 = vmatprep.subr.bf16.mxu0 0
        %821 = vmatpush2.bf16.msra.mxu0 0
        %822 = vmatprep.subr.bf16.mxu0 0
        %823 = vmatpush2.bf16.msra.mxu0 0
        %824 = vmatprep.subr.bf16.mxu0 0
        %825 = vmatpush2.bf16.msra.mxu0 0
        %826 = vmatprep.subr.bf16.mxu0 0
        %827 = vmatpush2.bf16.msra.mxu0 0
        %828 = vmatprep.subr.bf16.mxu0 0
        %829 = vmatpush2.bf16.msra.mxu0 0
        %830 = vmatprep.mubr.bf16.mxu0 0
        %831 = vmatmul.mubr.bf16.gmra.mxu0 %v675
        %v832 = vpop.f32.mrf.mxu0
        %v833 = vadd.f32 0.0, %v832
        %v834 = vpop.f32.mrf.mxu0
        %v835 = vpop.f32.mrf.mxu0
        %v836 = vpop.f32.mrf.mxu0
        %837 = vdwg.mxu0
        %v838 = vpack.c.bf16 %v833, %v833
        %s839 = scalar_lea.vmem [#allocation3], 4
        %840 = vst.msk [vmem:[%s839] sm:$0xf] %vm718, %v838
        %s841 = scalar_lea.vmem %s5, 16
        %v842 = vld [vmem:[%s841] sm:$0xf]
        %v843 = vld [vmem:[%s841 + $0x4] sm:$0xf]
        %v844 = vld [vmem:[%s841 + $0x8] sm:$0xf]
        %v845 = vld [vmem:[%s841 + $0xc] sm:$0xf]
        %v850 = vunpack.c.l.b16 %v842
        %v851 = vunpack.c.l.b16 %v843
        %v852 = vunpack.c.l.b16 %v844
        %v853 = vunpack.c.l.b16 %v845
        %v854 = vpack.c.b16 %v851, %v850
        %v855 = vpack.c.b16 %v853, %v852
        %858 = vmatprep.subr.bf16.mxu0 0
        %859 = vmatpush1.bf16.msra.mxu0 0
        %860 = vmatprep.subr.bf16.mxu0 0
        %861 = vmatpush1.bf16.msra.mxu0 0
        %862 = vmatprep.subr.bf16.mxu0 0
        %863 = vmatpush1.bf16.msra.mxu0 0
        %864 = vmatprep.subr.bf16.mxu0 0
        %865 = vmatpush1.bf16.msra.mxu0 0
        %866 = vmatprep.subr.bf16.mxu0 0
        %867 = vmatpush1.bf16.msra.mxu0 0
        %868 = vmatprep.subr.bf16.mxu0 0
        %869 = vmatpush1.bf16.msra.mxu0 0
        %870 = vmatprep.subr.bf16.mxu0 0
        %871 = vmatpush1.bf16.msra.mxu0 %v855
        %872 = vmatprep.subr.bf16.mxu0 0
        %873 = vmatpush1.bf16.msra.mxu0 %v854
        %874 = vmatprep.subr.bf16.mxu0 0
        %875 = vmatpush2.bf16.msra.mxu0 0
        %876 = vmatprep.subr.bf16.mxu0 0
        %877 = vmatpush2.bf16.msra.mxu0 0
        %878 = vmatprep.subr.bf16.mxu0 0
        %879 = vmatpush2.bf16.msra.mxu0 0
        %880 = vmatprep.subr.bf16.mxu0 0
        %881 = vmatpush2.bf16.msra.mxu0 0
        %882 = vmatprep.subr.bf16.mxu0 0
        %883 = vmatpush2.bf16.msra.mxu0 0
        %884 = vmatprep.subr.bf16.mxu0 0
        %885 = vmatpush2.bf16.msra.mxu0 0
        %886 = vmatprep.subr.bf16.mxu0 0
        %887 = vmatpush2.bf16.msra.mxu0 0
        %888 = vmatprep.subr.bf16.mxu0 0
        %889 = vmatpush2.bf16.msra.mxu0 0
        %890 = vmatprep.mubr.bf16.mxu0 0
        %891 = vmatmul.mubr.bf16.gmra.mxu0 %v737
        %v892 = vpop.f32.mrf.mxu0
        %v893 = vadd.f32 0.0, %v892
        %v894 = vpop.f32.mrf.mxu0
        %v895 = vpop.f32.mrf.mxu0
        %v896 = vpop.f32.mrf.mxu0
        %897 = vdwg.mxu0
        %v898 = vpack.c.bf16 %v893, %v893
        %s899 = scalar_lea.vmem [#allocation4], 4
        %900 = vst.msk [vmem:[%s899] sm:$0xf] %vm718, %v898
        %s901 = scalar_lea.vmem %s4, 32
        %v902 = vld [vmem:[%s901] sm:$0xf]
        %v903 = vld [vmem:[%s901 + $0x4] sm:$0xf]
        %v904 = vld [vmem:[%s901 + $0x8] sm:$0xf]
        %v905 = vld [vmem:[%s901 + $0xc] sm:$0xf]
        %v910 = vunpack.c.l.b16 %v902
        %v911 = vunpack.c.l.b16 %v903
        %v912 = vunpack.c.l.b16 %v904
        %v913 = vunpack.c.l.b16 %v905
        %v914 = vpack.c.b16 %v911, %v910
        %v915 = vpack.c.b16 %v913, %v912
        %918 = vmatprep.subr.bf16.mxu0 0
        %919 = vmatpush1.bf16.msra.mxu0 0
        %920 = vmatprep.subr.bf16.mxu0 0
        %921 = vmatpush1.bf16.msra.mxu0 0
        %922 = vmatprep.subr.bf16.mxu0 0
        %923 = vmatpush1.bf16.msra.mxu0 0
        %924 = vmatprep.subr.bf16.mxu0 0
        %925 = vmatpush1.bf16.msra.mxu0 0
        %926 = vmatprep.subr.bf16.mxu0 0
        %927 = vmatpush1.bf16.msra.mxu0 0
        %928 = vmatprep.subr.bf16.mxu0 0
        %929 = vmatpush1.bf16.msra.mxu0 0
        %930 = vmatprep.subr.bf16.mxu0 0
        %931 = vmatpush1.bf16.msra.mxu0 %v915
        %932 = vmatprep.subr.bf16.mxu0 0
        %933 = vmatpush1.bf16.msra.mxu0 %v914
        %934 = vmatprep.subr.bf16.mxu0 0
        %935 = vmatpush2.bf16.msra.mxu0 0
        %936 = vmatprep.subr.bf16.mxu0 0
        %937 = vmatpush2.bf16.msra.mxu0 0
        %938 = vmatprep.subr.bf16.mxu0 0
        %939 = vmatpush2.bf16.msra.mxu0 0
        %940 = vmatprep.subr.bf16.mxu0 0
        %941 = vmatpush2.bf16.msra.mxu0 0
        %942 = vmatprep.subr.bf16.mxu0 0
        %943 = vmatpush2.bf16.msra.mxu0 0
        %944 = vmatprep.subr.bf16.mxu0 0
        %945 = vmatpush2.bf16.msra.mxu0 0
        %946 = vmatprep.subr.bf16.mxu0 0
        %947 = vmatpush2.bf16.msra.mxu0 0
        %948 = vmatprep.subr.bf16.mxu0 0
        %949 = vmatpush2.bf16.msra.mxu0 0
        %950 = vmatprep.mubr.bf16.mxu0 0
        %951 = vmatmul.mubr.bf16.gmra.mxu0 %v675
        %v952 = vpop.f32.mrf.mxu0
        %v953 = vadd.f32 0.0, %v952
        %v954 = vpop.f32.mrf.mxu0
        %v955 = vpop.f32.mrf.mxu0
        %v956 = vpop.f32.mrf.mxu0
        %957 = vdwg.mxu0
        %v958 = vpack.c.bf16 %v953, %v953
        %s959 = scalar_lea.vmem [#allocation3], 8
        %960 = vst.msk [vmem:[%s959] sm:$0xf] %vm718, %v958
        %s961 = scalar_lea.vmem %s5, 32
        %v962 = vld [vmem:[%s961] sm:$0xf]
        %v963 = vld [vmem:[%s961 + $0x4] sm:$0xf]
        %v964 = vld [vmem:[%s961 + $0x8] sm:$0xf]
        %v965 = vld [vmem:[%s961 + $0xc] sm:$0xf]
        %v970 = vunpack.c.l.b16 %v962
        %v971 = vunpack.c.l.b16 %v963
        %v972 = vunpack.c.l.b16 %v964
        %v973 = vunpack.c.l.b16 %v965
        %v974 = vpack.c.b16 %v971, %v970
        %v975 = vpack.c.b16 %v973, %v972
        %978 = vmatprep.subr.bf16.mxu0 0
        %979 = vmatpush1.bf16.msra.mxu0 0
        %980 = vmatprep.subr.bf16.mxu0 0
        %981 = vmatpush1.bf16.msra.mxu0 0
        %982 = vmatprep.subr.bf16.mxu0 0
        %983 = vmatpush1.bf16.msra.mxu0 0
        %984 = vmatprep.subr.bf16.mxu0 0
        %985 = vmatpush1.bf16.msra.mxu0 0
        %986 = vmatprep.subr.bf16.mxu0 0
        %987 = vmatpush1.bf16.msra.mxu0 0
        %988 = vmatprep.subr.bf16.mxu0 0
        %989 = vmatpush1.bf16.msra.mxu0 0
        %990 = vmatprep.subr.bf16.mxu0 0
        %991 = vmatpush1.bf16.msra.mxu0 %v975
        %992 = vmatprep.subr.bf16.mxu0 0
        %993 = vmatpush1.bf16.msra.mxu0 %v974
        %994 = vmatprep.subr.bf16.mxu0 0
        %995 = vmatpush2.bf16.msra.mxu0 0
        %996 = vmatprep.subr.bf16.mxu0 0
        %997 = vmatpush2.bf16.msra.mxu0 0
        %998 = vmatprep.subr.bf16.mxu0 0
        %999 = vmatpush2.bf16.msra.mxu0 0
        %1000 = vmatprep.subr.bf16.mxu0 0
        %1001 = vmatpush2.bf16.msra.mxu0 0
        %1002 = vmatprep.subr.bf16.mxu0 0
        %1003 = vmatpush2.bf16.msra.mxu0 0
        %1004 = vmatprep.subr.bf16.mxu0 0
        %1005 = vmatpush2.bf16.msra.mxu0 0
        %1006 = vmatprep.subr.bf16.mxu0 0
        %1007 = vmatpush2.bf16.msra.mxu0 0
        %1008 = vmatprep.subr.bf16.mxu0 0
        %1009 = vmatpush2.bf16.msra.mxu0 0
        %1010 = vmatprep.mubr.bf16.mxu0 0
        %1011 = vmatmul.mubr.bf16.gmra.mxu0 %v737
        %v1012 = vpop.f32.mrf.mxu0
        %v1013 = vadd.f32 0.0, %v1012
        %v1014 = vpop.f32.mrf.mxu0
        %v1015 = vpop.f32.mrf.mxu0
        %v1016 = vpop.f32.mrf.mxu0
        %1017 = vdwg.mxu0
        %v1018 = vpack.c.bf16 %v1013, %v1013
        %s1019 = scalar_lea.vmem [#allocation4], 8
        %1020 = vst.msk [vmem:[%s1019] sm:$0xf] %vm718, %v1018
        %s1021 = scalar_lea.vmem %s4, 48
        %v1022 = vld [vmem:[%s1021] sm:$0xf]
        %v1023 = vld [vmem:[%s1021 + $0x4] sm:$0xf]
        %v1024 = vld [vmem:[%s1021 + $0x8] sm:$0xf]
        %v1025 = vld [vmem:[%s1021 + $0xc] sm:$0xf]
        %v1030 = vunpack.c.l.b16 %v1022
        %v1031 = vunpack.c.l.b16 %v1023
        %v1032 = vunpack.c.l.b16 %v1024
        %v1033 = vunpack.c.l.b16 %v1025
        %v1034 = vpack.c.b16 %v1031, %v1030
        %v1035 = vpack.c.b16 %v1033, %v1032
        %1038 = vmatprep.subr.bf16.mxu0 0
        %1039 = vmatpush1.bf16.msra.mxu0 0
        %1040 = vmatprep.subr.bf16.mxu0 0
        %1041 = vmatpush1.bf16.msra.mxu0 0
        %1042 = vmatprep.subr.bf16.mxu0 0
        %1043 = vmatpush1.bf16.msra.mxu0 0
        %1044 = vmatprep.subr.bf16.mxu0 0
        %1045 = vmatpush1.bf16.msra.mxu0 0
        %1046 = vmatprep.subr.bf16.mxu0 0
        %1047 = vmatpush1.bf16.msra.mxu0 0
        %1048 = vmatprep.subr.bf16.mxu0 0
        %1049 = vmatpush1.bf16.msra.mxu0 0
        %1050 = vmatprep.subr.bf16.mxu0 0
        %1051 = vmatpush1.bf16.msra.mxu0 %v1035
        %1052 = vmatprep.subr.bf16.mxu0 0
        %1053 = vmatpush1.bf16.msra.mxu0 %v1034
        %1054 = vmatprep.subr.bf16.mxu0 0
        %1055 = vmatpush2.bf16.msra.mxu0 0
        %1056 = vmatprep.subr.bf16.mxu0 0
        %1057 = vmatpush2.bf16.msra.mxu0 0
        %1058 = vmatprep.subr.bf16.mxu0 0
        %1059 = vmatpush2.bf16.msra.mxu0 0
        %1060 = vmatprep.subr.bf16.mxu0 0
        %1061 = vmatpush2.bf16.msra.mxu0 0
        %1062 = vmatprep.subr.bf16.mxu0 0
        %1063 = vmatpush2.bf16.msra.mxu0 0
        %1064 = vmatprep.subr.bf16.mxu0 0
        %1065 = vmatpush2.bf16.msra.mxu0 0
        %1066 = vmatprep.subr.bf16.mxu0 0
        %1067 = vmatpush2.bf16.msra.mxu0 0
        %1068 = vmatprep.subr.bf16.mxu0 0
        %1069 = vmatpush2.bf16.msra.mxu0 0
        %1070 = vmatprep.mubr.bf16.mxu0 0
        %1071 = vmatmul.mubr.bf16.gmra.mxu0 %v675
        %v1072 = vpop.f32.mrf.mxu0
        %v1073 = vadd.f32 0.0, %v1072
        %v1074 = vpop.f32.mrf.mxu0
        %v1075 = vpop.f32.mrf.mxu0
        %v1076 = vpop.f32.mrf.mxu0
        %1077 = vdwg.mxu0
        %v1078 = vpack.c.bf16 %v1073, %v1073
        %s1079 = scalar_lea.vmem [#allocation3], 12
        %1080 = vst.msk [vmem:[%s1079] sm:$0xf] %vm718, %v1078
        %s1081 = scalar_lea.vmem %s5, 48
        %v1082 = vld [vmem:[%s1081] sm:$0xf]
        %v1083 = vld [vmem:[%s1081 + $0x4] sm:$0xf]
        %v1084 = vld [vmem:[%s1081 + $0x8] sm:$0xf]
        %v1085 = vld [vmem:[%s1081 + $0xc] sm:$0xf]
        %v1090 = vunpack.c.l.b16 %v1082
        %v1091 = vunpack.c.l.b16 %v1083
        %v1092 = vunpack.c.l.b16 %v1084
        %v1093 = vunpack.c.l.b16 %v1085
        %v1094 = vpack.c.b16 %v1091, %v1090
        %v1095 = vpack.c.b16 %v1093, %v1092
        %1098 = vmatprep.subr.bf16.mxu0 0
        %1099 = vmatpush1.bf16.msra.mxu0 0
        %1100 = vmatprep.subr.bf16.mxu0 0
        %1101 = vmatpush1.bf16.msra.mxu0 0
        %1102 = vmatprep.subr.bf16.mxu0 0
        %1103 = vmatpush1.bf16.msra.mxu0 0
        %1104 = vmatprep.subr.bf16.mxu0 0
        %1105 = vmatpush1.bf16.msra.mxu0 0
        %1106 = vmatprep.subr.bf16.mxu0 0
        %1107 = vmatpush1.bf16.msra.mxu0 0
        %1108 = vmatprep.subr.bf16.mxu0 0
        %1109 = vmatpush1.bf16.msra.mxu0 0
        %1110 = vmatprep.subr.bf16.mxu0 0
        %1111 = vmatpush1.bf16.msra.mxu0 %v1095
        %1112 = vmatprep.subr.bf16.mxu0 0
        %1113 = vmatpush1.bf16.msra.mxu0 %v1094
        %1114 = vmatprep.subr.bf16.mxu0 0
        %1115 = vmatpush2.bf16.msra.mxu0 0
        %1116 = vmatprep.subr.bf16.mxu0 0
        %1117 = vmatpush2.bf16.msra.mxu0 0
        %1118 = vmatprep.subr.bf16.mxu0 0
        %1119 = vmatpush2.bf16.msra.mxu0 0
        %1120 = vmatprep.subr.bf16.mxu0 0
        %1121 = vmatpush2.bf16.msra.mxu0 0
        %1122 = vmatprep.subr.bf16.mxu0 0
        %1123 = vmatpush2.bf16.msra.mxu0 0
        %1124 = vmatprep.subr.bf16.mxu0 0
        %1125 = vmatpush2.bf16.msra.mxu0 0
        %1126 = vmatprep.subr.bf16.mxu0 0
        %1127 = vmatpush2.bf16.msra.mxu0 0
        %1128 = vmatprep.subr.bf16.mxu0 0
        %1129 = vmatpush2.bf16.msra.mxu0 0
        %1130 = vmatprep.mubr.bf16.mxu0 0
        %1131 = vmatmul.mubr.bf16.gmra.mxu0 %v737
        %v1132 = vpop.f32.mrf.mxu0
        %v1133 = vadd.f32 0.0, %v1132
        %v1134 = vpop.f32.mrf.mxu0
        %v1135 = vpop.f32.mrf.mxu0
        %v1136 = vpop.f32.mrf.mxu0
        %1137 = vdwg.mxu0
        %v1138 = vpack.c.bf16 %v1133, %v1133
        %s1139 = scalar_lea.vmem [#allocation4], 12
        %1140 = vst.msk [vmem:[%s1139] sm:$0xf] %vm718, %v1138
        %v1141 = vld [vmem:[#allocation2] sm:$0xf]
        %v1142 = vld [vmem:[#allocation2 + $0x4] sm:$0xf]
        %v1143 = vld [vmem:[#allocation2 + $0x8] sm:$0xf]
        %v1144 = vld [vmem:[#allocation2 + $0xc] sm:$0xf]
        %v1145 = vld [vmem:[#allocation3] sm:$0xf]
        %v1146 = vld [vmem:[#allocation3 + $0x4] sm:$0xf]
        %v1147 = vld [vmem:[#allocation3 + $0x8] sm:$0xf]
        %v1148 = vld [vmem:[#allocation3 + $0xc] sm:$0xf]
        %v1149 = vld [vmem:[#allocation4] sm:$0xf]
        %v1150 = vld [vmem:[#allocation4 + $0x4] sm:$0xf]
        %v1151 = vld [vmem:[#allocation4 + $0x8] sm:$0xf]
        %v1152 = vld [vmem:[#allocation4 + $0xc] sm:$0xf]
        %vm1153 = vcmask 64512
        %v1155 = vsel %vm1153, %v1141, 0
        %v1158 = vsel %vm1153, %v1145, 0
        %1160 = vmatprep.subr.bf16.mxu0 0
        %1161 = vmatpush1.bf16.xpose.msra.mxu0 0
        %1162 = vmatprep.subr.bf16.mxu0 0
        %1163 = vmatpush1.bf16.xpose.msra.mxu0 0
        %1164 = vmatprep.subr.bf16.mxu0 0
        %1165 = vmatpush1.bf16.xpose.msra.mxu0 0
        %1166 = vmatprep.subr.bf16.mxu0 0
        %1167 = vmatpush1.bf16.xpose.msra.mxu0 0
        %1168 = vmatprep.subr.bf16.mxu0 0
        %1169 = vmatpush1.bf16.xpose.msra.mxu0 0
        %1170 = vmatprep.subr.bf16.mxu0 0
        %1171 = vmatpush1.bf16.xpose.msra.mxu0 0
        %1172 = vmatprep.subr.bf16.mxu0 0
        %1173 = vmatpush1.bf16.xpose.msra.mxu0 0
        %1174 = vmatprep.subr.bf16.mxu0 0
        %1175 = vmatpush1.bf16.xpose.msra.mxu0 %v1158
        %1176 = vmatprep.subr.bf16.mxu0 0
        %1177 = vmatpush2.bf16.xpose.msra.mxu0 0
        %1178 = vmatprep.subr.bf16.mxu0 0
        %1179 = vmatpush2.bf16.xpose.msra.mxu0 0
        %1180 = vmatprep.subr.bf16.mxu0 0
        %1181 = vmatpush2.bf16.xpose.msra.mxu0 0
        %1182 = vmatprep.subr.bf16.mxu0 0
        %1183 = vmatpush2.bf16.xpose.msra.mxu0 0
        %1184 = vmatprep.subr.bf16.mxu0 0
        %1185 = vmatpush2.bf16.xpose.msra.mxu0 0
        %1186 = vmatprep.subr.bf16.mxu0 0
        %1187 = vmatpush2.bf16.xpose.msra.mxu0 0
        %1188 = vmatprep.subr.bf16.mxu0 0
        %1189 = vmatpush2.bf16.xpose.msra.mxu0 0
        %1190 = vmatprep.subr.bf16.mxu0 0
        %1191 = vmatpush2.bf16.xpose.msra.mxu0 0
        %1192 = vmatprep.mubr.bf16.mxu0 0
        %1193 = vmatmul.mubr.bf16.gmra.mxu0 %v1155
        %v1194 = vpop.f32.mrf.mxu0
        %v1195 = vadd.f32 0.0, %v1194
        %v1196 = vpop.f32.mrf.mxu0
        %v1197 = vpop.f32.mrf.mxu0
        %v1198 = vpop.f32.mrf.mxu0
        %1199 = vdwg.mxu0
        %v1201 = vsel %vm1153, %v1142, 0
        %v1204 = vsel %vm1153, %v1146, 0
        %1206 = vmatprep.subr.bf16.mxu0 0
        %1207 = vmatpush1.bf16.xpose.msra.mxu0 0
        %1208 = vmatprep.subr.bf16.mxu0 0
        %1209 = vmatpush1.bf16.xpose.msra.mxu0 0
        %1210 = vmatprep.subr.bf16.mxu0 0
        %1211 = vmatpush1.bf16.xpose.msra.mxu0 0
        %1212 = vmatprep.subr.bf16.mxu0 0
        %1213 = vmatpush1.bf16.xpose.msra.mxu0 0
        %1214 = vmatprep.subr.bf16.mxu0 0
        %1215 = vmatpush1.bf16.xpose.msra.mxu0 0
        %1216 = vmatprep.subr.bf16.mxu0 0
        %1217 = vmatpush1.bf16.xpose.msra.mxu0 0
        %1218 = vmatprep.subr.bf16.mxu0 0
        %1219 = vmatpush1.bf16.xpose.msra.mxu0 0
        %1220 = vmatprep.subr.bf16.mxu0 0
        %1221 = vmatpush1.bf16.xpose.msra.mxu0 %v1204
        %1222 = vmatprep.subr.bf16.mxu0 0
        %1223 = vmatpush2.bf16.xpose.msra.mxu0 0
        %1224 = vmatprep.subr.bf16.mxu0 0
        %1225 = vmatpush2.bf16.xpose.msra.mxu0 0
        %1226 = vmatprep.subr.bf16.mxu0 0
        %1227 = vmatpush2.bf16.xpose.msra.mxu0 0
        %1228 = vmatprep.subr.bf16.mxu0 0
        %1229 = vmatpush2.bf16.xpose.msra.mxu0 0
        %1230 = vmatprep.subr.bf16.mxu0 0
        %1231 = vmatpush2.bf16.xpose.msra.mxu0 0
        %1232 = vmatprep.subr.bf16.mxu0 0
        %1233 = vmatpush2.bf16.xpose.msra.mxu0 0
        %1234 = vmatprep.subr.bf16.mxu0 0
        %1235 = vmatpush2.bf16.xpose.msra.mxu0 0
        %1236 = vmatprep.subr.bf16.mxu0 0
        %1237 = vmatpush2.bf16.xpose.msra.mxu0 0
        %1238 = vmatprep.mubr.bf16.mxu0 0
        %1239 = vmatmul.mubr.bf16.gmra.mxu0 %v1201
        %v1240 = vpop.f32.mrf.mxu0
        %v1241 = vadd.f32 0.0, %v1240
        %v1242 = vpop.f32.mrf.mxu0
        %v1243 = vpop.f32.mrf.mxu0
        %v1244 = vpop.f32.mrf.mxu0
        %1245 = vdwg.mxu0
        %v1247 = vsel %vm1153, %v1143, 0
        %v1250 = vsel %vm1153, %v1147, 0
        %1252 = vmatprep.subr.bf16.mxu0 0
        %1253 = vmatpush1.bf16.xpose.msra.mxu0 0
        %1254 = vmatprep.subr.bf16.mxu0 0
        %1255 = vmatpush1.bf16.xpose.msra.mxu0 0
        %1256 = vmatprep.subr.bf16.mxu0 0
        %1257 = vmatpush1.bf16.xpose.msra.mxu0 0
        %1258 = vmatprep.subr.bf16.mxu0 0
        %1259 = vmatpush1.bf16.xpose.msra.mxu0 0
        %1260 = vmatprep.subr.bf16.mxu0 0
        %1261 = vmatpush1.bf16.xpose.msra.mxu0 0
        %1262 = vmatprep.subr.bf16.mxu0 0
        %1263 = vmatpush1.bf16.xpose.msra.mxu0 0
        %1264 = vmatprep.subr.bf16.mxu0 0
        %1265 = vmatpush1.bf16.xpose.msra.mxu0 0
        %1266 = vmatprep.subr.bf16.mxu0 0
        %1267 = vmatpush1.bf16.xpose.msra.mxu0 %v1250
        %1268 = vmatprep.subr.bf16.mxu0 0
        %1269 = vmatpush2.bf16.xpose.msra.mxu0 0
        %1270 = vmatprep.subr.bf16.mxu0 0
        %1271 = vmatpush2.bf16.xpose.msra.mxu0 0
        %1272 = vmatprep.subr.bf16.mxu0 0
        %1273 = vmatpush2.bf16.xpose.msra.mxu0 0
        %1274 = vmatprep.subr.bf16.mxu0 0
        %1275 = vmatpush2.bf16.xpose.msra.mxu0 0
        %1276 = vmatprep.subr.bf16.mxu0 0
        %1277 = vmatpush2.bf16.xpose.msra.mxu0 0
        %1278 = vmatprep.subr.bf16.mxu0 0
        %1279 = vmatpush2.bf16.xpose.msra.mxu0 0
        %1280 = vmatprep.subr.bf16.mxu0 0
        %1281 = vmatpush2.bf16.xpose.msra.mxu0 0
        %1282 = vmatprep.subr.bf16.mxu0 0
        %1283 = vmatpush2.bf16.xpose.msra.mxu0 0
        %1284 = vmatprep.mubr.bf16.mxu0 0
        %1285 = vmatmul.mubr.bf16.gmra.mxu0 %v1247
        %v1286 = vpop.f32.mrf.mxu0
        %v1287 = vadd.f32 0.0, %v1286
        %v1288 = vpop.f32.mrf.mxu0
        %v1289 = vpop.f32.mrf.mxu0
        %v1290 = vpop.f32.mrf.mxu0
        %1291 = vdwg.mxu0
        %v1293 = vsel %vm1153, %v1144, 0
        %v1296 = vsel %vm1153, %v1148, 0
        %1298 = vmatprep.subr.bf16.mxu0 0
        %1299 = vmatpush1.bf16.xpose.msra.mxu0 0
        %1300 = vmatprep.subr.bf16.mxu0 0
        %1301 = vmatpush1.bf16.xpose.msra.mxu0 0
        %1302 = vmatprep.subr.bf16.mxu0 0
        %1303 = vmatpush1.bf16.xpose.msra.mxu0 0
        %1304 = vmatprep.subr.bf16.mxu0 0
        %1305 = vmatpush1.bf16.xpose.msra.mxu0 0
        %1306 = vmatprep.subr.bf16.mxu0 0
        %1307 = vmatpush1.bf16.xpose.msra.mxu0 0
        %1308 = vmatprep.subr.bf16.mxu0 0
        %1309 = vmatpush1.bf16.xpose.msra.mxu0 0
        %1310 = vmatprep.subr.bf16.mxu0 0
        %1311 = vmatpush1.bf16.xpose.msra.mxu0 0
        %1312 = vmatprep.subr.bf16.mxu0 0
        %1313 = vmatpush1.bf16.xpose.msra.mxu0 %v1296
        %1314 = vmatprep.subr.bf16.mxu0 0
        %1315 = vmatpush2.bf16.xpose.msra.mxu0 0
        %1316 = vmatprep.subr.bf16.mxu0 0
        %1317 = vmatpush2.bf16.xpose.msra.mxu0 0
        %1318 = vmatprep.subr.bf16.mxu0 0
        %1319 = vmatpush2.bf16.xpose.msra.mxu0 0
        %1320 = vmatprep.subr.bf16.mxu0 0
        %1321 = vmatpush2.bf16.xpose.msra.mxu0 0
        %1322 = vmatprep.subr.bf16.mxu0 0
        %1323 = vmatpush2.bf16.xpose.msra.mxu0 0
        %1324 = vmatprep.subr.bf16.mxu0 0
        %1325 = vmatpush2.bf16.xpose.msra.mxu0 0
        %1326 = vmatprep.subr.bf16.mxu0 0
        %1327 = vmatpush2.bf16.xpose.msra.mxu0 0
        %1328 = vmatprep.subr.bf16.mxu0 0
        %1329 = vmatpush2.bf16.xpose.msra.mxu0 0
        %1330 = vmatprep.mubr.bf16.mxu0 0
        %1331 = vmatmul.mubr.bf16.gmra.mxu0 %v1293
        %v1332 = vpop.f32.mrf.mxu0
        %v1333 = vadd.f32 0.0, %v1332
        %v1334 = vpop.f32.mrf.mxu0
        %v1335 = vpop.f32.mrf.mxu0
        %v1336 = vpop.f32.mrf.mxu0
        %1337 = vdwg.mxu0
        %v1338 = vld [vmem:[#allocation5] sm:$0xff]
        %v1339 = vld [vmem:[#allocation5 + $0x8] sm:$0xff]
        %v1340 = vld [vmem:[#allocation5 + $0x10] sm:$0xff]
        %v1341 = vld [vmem:[#allocation5 + $0x18] sm:$0xff]
        %v1342 = vsel %vm1153, %v1195, -inf
        %1343 = vmax.xlane.f32.xlu0 %v1342
        %v1344 = vpop.xlane.xlu0 %1343
        %v1345 = vsel %vm1153, %v1241, -inf
        %1346 = vmax.xlane.f32.xlu0 %v1345
        %v1347 = vpop.xlane.xlu0 %1346
        %v1348 = vsel %vm1153, %v1287, -inf
        %1349 = vmax.xlane.f32.xlu0 %v1348
        %v1350 = vpop.xlane.xlu0 %1349
        %v1351 = vsel %vm1153, %v1333, -inf
        %1352 = vmax.xlane.f32.xlu0 %v1351
        %v1353 = vpop.xlane.xlu0 %1352
        %v1354 = vmax.f32 %v1338, %v1344
        %v1355 = vmax.f32 %v1339, %v1347
        %v1356 = vmax.f32 %v1340, %v1350
        %v1357 = vmax.f32 %v1341, %v1353
        %v1358 = vsub.f32 %v1338, %v1354
        %v1359 = vsub.f32 %v1339, %v1355
        %v1360 = vsub.f32 %v1340, %v1356
        %v1361 = vsub.f32 %v1341, %v1357
        %v1362 = vmul.f32 %v1358, 1.442695
        %v1363 = vpow.pop %v1362
        %v1364 = vmul.f32 %v1359, 1.442695
        %v1365 = vpow.pop %v1364
        %v1366 = vmul.f32 %v1360, 1.442695
        %v1367 = vpow.pop %v1366
        %v1368 = vmul.f32 %v1361, 1.442695
        %v1369 = vpow.pop %v1368
        %1371 = vset.pattern.permute.xlu0 0
        %1372 = vperm.xlu0 %1371, %v1354
        %v1373 = vpop.permute.xlu0 %1372
        %1376 = vset.pattern.permute.xlu0 0
        %1377 = vperm.xlu0 %1376, %v1355
        %v1378 = vpop.permute.xlu0 %1377
        %1381 = vset.pattern.permute.xlu0 0
        %1382 = vperm.xlu0 %1381, %v1356
        %v1383 = vpop.permute.xlu0 %1382
        %1386 = vset.pattern.permute.xlu0 0
        %1387 = vperm.xlu0 %1386, %v1357
        %v1388 = vpop.permute.xlu0 %1387
        %v1390 = vsub.f32 %v1195, %v1373
        %v1391 = vsub.f32 %v1241, %v1378
        %v1392 = vsub.f32 %v1287, %v1383
        %v1393 = vsub.f32 %v1333, %v1388
        %v1394 = vmul.f32 %v1390, 1.442695
        %v1395 = vpow.pop %v1394
        %v1396 = vmul.f32 %v1391, 1.442695
        %v1397 = vpow.pop %v1396
        %v1398 = vmul.f32 %v1392, 1.442695
        %v1399 = vpow.pop %v1398
        %v1400 = vmul.f32 %v1393, 1.442695
        %v1401 = vpow.pop %v1400
        %v1402 = vld [vmem:[#allocation6] sm:$0xff]
        %v1403 = vld [vmem:[#allocation6 + $0x8] sm:$0xff]
        %v1404 = vld [vmem:[#allocation6 + $0x10] sm:$0xff]
        %v1405 = vld [vmem:[#allocation6 + $0x18] sm:$0xff]
        %v1406 = vmul.f32 %v1363, %v1402
        %v1407 = vmul.f32 %v1365, %v1403
        %v1408 = vmul.f32 %v1367, %v1404
        %v1409 = vmul.f32 %v1369, %v1405
        %v1410 = vsel %vm1153, %v1395, 0.0
        %1411 = vadd.xlane.f32.xlu0 %v1410
        %v1412 = vpop.xlane.xlu0 %1411
        %v1413 = vsel %vm1153, %v1397, 0.0
        %1414 = vadd.xlane.f32.xlu0 %v1413
        %v1415 = vpop.xlane.xlu0 %1414
        %v1416 = vsel %vm1153, %v1399, 0.0
        %1417 = vadd.xlane.f32.xlu0 %v1416
        %v1418 = vpop.xlane.xlu0 %1417
        %v1419 = vsel %vm1153, %v1401, 0.0
        %1420 = vadd.xlane.f32.xlu0 %v1419
        %v1421 = vpop.xlane.xlu0 %1420
        %v1422 = vadd.f32 %v1406, %v1412
        %v1423 = vadd.f32 %v1407, %v1415
        %v1424 = vadd.f32 %v1408, %v1418
        %v1425 = vadd.f32 %v1409, %v1421
        %vm1426 = vcmask 7168
        %1427 = vst.msk [vmem:[#allocation6] sm:$0xff] %vm1426, %v1422
        %1428 = vst.msk [vmem:[#allocation6 + $0x8] sm:$0xff] %vm1426, %v1423
        %1429 = vst.msk [vmem:[#allocation6 + $0x10] sm:$0xff] %vm1426, %v1424
        %1430 = vst.msk [vmem:[#allocation6 + $0x18] sm:$0xff] %vm1426, %v1425
        %v1431 = vld [vmem:[#allocation7] sm:$0xff]
        %v1432 = vld [vmem:[#allocation7 + $0x8] sm:$0xff]
        %v1433 = vld [vmem:[#allocation7 + $0x10] sm:$0xff]
        %v1434 = vld [vmem:[#allocation7 + $0x18] sm:$0xff]
        %1436 = vset.pattern.permute.xlu0 0
        %1437 = vperm.xlu0 %1436, %v1363
        %v1438 = vpop.permute.xlu0 %1437
        %1441 = vset.pattern.permute.xlu0 0
        %1442 = vperm.xlu0 %1441, %v1365
        %v1443 = vpop.permute.xlu0 %1442
        %1446 = vset.pattern.permute.xlu0 0
        %1447 = vperm.xlu0 %1446, %v1367
        %v1448 = vpop.permute.xlu0 %1447
        %1451 = vset.pattern.permute.xlu0 0
        %1452 = vperm.xlu0 %1451, %v1369
        %v1453 = vpop.permute.xlu0 %1452
        %v1455 = vmul.f32 %v1438, %v1431
        %v1456 = vmul.f32 %v1443, %v1432
        %v1457 = vmul.f32 %v1448, %v1433
        %v1458 = vmul.f32 %v1453, %v1434
        %v1459 = vpack.c.bf16 %v1395, %v1395
        %v1460 = vpack.c.bf16 %v1397, %v1397
        %v1461 = vpack.c.bf16 %v1399, %v1399
        %v1462 = vpack.c.bf16 %v1401, %v1401
        %v1464 = vsel %vm1153, %v1459, 0
        %vm1466 = vcmask 1043456
        %v1468 = vsel %vm1466, %v1149, 0
        %1470 = vmatprep.subr.bf16.mxu0 0
        %1471 = vmatpush1.bf16.msra.mxu0 0
        %1472 = vmatprep.subr.bf16.mxu0 0
        %1473 = vmatpush1.bf16.msra.mxu0 0
        %1474 = vmatprep.subr.bf16.mxu0 0
        %1475 = vmatpush1.bf16.msra.mxu0 0
        %1476 = vmatprep.subr.bf16.mxu0 0
        %1477 = vmatpush1.bf16.msra.mxu0 0
        %1478 = vmatprep.subr.bf16.mxu0 0
        %1479 = vmatpush1.bf16.msra.mxu0 0
        %1480 = vmatprep.subr.bf16.mxu0 0
        %1481 = vmatpush1.bf16.msra.mxu0 0
        %1482 = vmatprep.subr.bf16.mxu0 0
        %1483 = vmatpush1.bf16.msra.mxu0 0
        %1484 = vmatprep.subr.bf16.mxu0 0
        %1485 = vmatpush1.bf16.msra.mxu0 %v1468
        %1486 = vmatprep.subr.bf16.mxu0 0
        %1487 = vmatpush2.bf16.msra.mxu0 0
        %1488 = vmatprep.subr.bf16.mxu0 0
        %1489 = vmatpush2.bf16.msra.mxu0 0
        %1490 = vmatprep.subr.bf16.mxu0 0
        %1491 = vmatpush2.bf16.msra.mxu0 0
        %1492 = vmatprep.subr.bf16.mxu0 0
        %1493 = vmatpush2.bf16.msra.mxu0 0
        %1494 = vmatprep.subr.bf16.mxu0 0
        %1495 = vmatpush2.bf16.msra.mxu0 0
        %1496 = vmatprep.subr.bf16.mxu0 0
        %1497 = vmatpush2.bf16.msra.mxu0 0
        %1498 = vmatprep.subr.bf16.mxu0 0
        %1499 = vmatpush2.bf16.msra.mxu0 0
        %1500 = vmatprep.subr.bf16.mxu0 0
        %1501 = vmatpush2.bf16.msra.mxu0 0
        %1502 = vmatprep.mubr.bf16.mxu0 0
        %1503 = vmatmul.mubr.bf16.gmra.mxu0 %v1464
        %v1504 = vpop.f32.mrf.mxu0
        %v1505 = vadd.f32 0.0, %v1504
        %v1506 = vpop.f32.mrf.mxu0
        %v1507 = vpop.f32.mrf.mxu0
        %v1508 = vpop.f32.mrf.mxu0
        %1509 = vdwg.mxu0
        %v1511 = vsel %vm1153, %v1460, 0
        %v1514 = vsel %vm1466, %v1150, 0
        %1516 = vmatprep.subr.bf16.mxu0 0
        %1517 = vmatpush1.bf16.msra.mxu0 0
        %1518 = vmatprep.subr.bf16.mxu0 0
        %1519 = vmatpush1.bf16.msra.mxu0 0
        %1520 = vmatprep.subr.bf16.mxu0 0
        %1521 = vmatpush1.bf16.msra.mxu0 0
        %1522 = vmatprep.subr.bf16.mxu0 0
        %1523 = vmatpush1.bf16.msra.mxu0 0
        %1524 = vmatprep.subr.bf16.mxu0 0
        %1525 = vmatpush1.bf16.msra.mxu0 0
        %1526 = vmatprep.subr.bf16.mxu0 0
        %1527 = vmatpush1.bf16.msra.mxu0 0
        %1528 = vmatprep.subr.bf16.mxu0 0
        %1529 = vmatpush1.bf16.msra.mxu0 0
        %1530 = vmatprep.subr.bf16.mxu0 0
        %1531 = vmatpush1.bf16.msra.mxu0 %v1514
        %1532 = vmatprep.subr.bf16.mxu0 0
        %1533 = vmatpush2.bf16.msra.mxu0 0
        %1534 = vmatprep.subr.bf16.mxu0 0
        %1535 = vmatpush2.bf16.msra.mxu0 0
        %1536 = vmatprep.subr.bf16.mxu0 0
        %1537 = vmatpush2.bf16.msra.mxu0 0
        %1538 = vmatprep.subr.bf16.mxu0 0
        %1539 = vmatpush2.bf16.msra.mxu0 0
        %1540 = vmatprep.subr.bf16.mxu0 0
        %1541 = vmatpush2.bf16.msra.mxu0 0
        %1542 = vmatprep.subr.bf16.mxu0 0
        %1543 = vmatpush2.bf16.msra.mxu0 0
        %1544 = vmatprep.subr.bf16.mxu0 0
        %1545 = vmatpush2.bf16.msra.mxu0 0
        %1546 = vmatprep.subr.bf16.mxu0 0
        %1547 = vmatpush2.bf16.msra.mxu0 0
        %1548 = vmatprep.mubr.bf16.mxu0 0
        %1549 = vmatmul.mubr.bf16.gmra.mxu0 %v1511
        %v1550 = vpop.f32.mrf.mxu0
        %v1551 = vadd.f32 0.0, %v1550
        %v1552 = vpop.f32.mrf.mxu0
        %v1553 = vpop.f32.mrf.mxu0
        %v1554 = vpop.f32.mrf.mxu0
        %1555 = vdwg.mxu0
        %v1557 = vsel %vm1153, %v1461, 0
        %v1560 = vsel %vm1466, %v1151, 0
        %1562 = vmatprep.subr.bf16.mxu0 0
        %1563 = vmatpush1.bf16.msra.mxu0 0
        %1564 = vmatprep.subr.bf16.mxu0 0
        %1565 = vmatpush1.bf16.msra.mxu0 0
        %1566 = vmatprep.subr.bf16.mxu0 0
        %1567 = vmatpush1.bf16.msra.mxu0 0
        %1568 = vmatprep.subr.bf16.mxu0 0
        %1569 = vmatpush1.bf16.msra.mxu0 0
        %1570 = vmatprep.subr.bf16.mxu0 0
        %1571 = vmatpush1.bf16.msra.mxu0 0
        %1572 = vmatprep.subr.bf16.mxu0 0
        %1573 = vmatpush1.bf16.msra.mxu0 0
        %1574 = vmatprep.subr.bf16.mxu0 0
        %1575 = vmatpush1.bf16.msra.mxu0 0
        %1576 = vmatprep.subr.bf16.mxu0 0
        %1577 = vmatpush1.bf16.msra.mxu0 %v1560
        %1578 = vmatprep.subr.bf16.mxu0 0
        %1579 = vmatpush2.bf16.msra.mxu0 0
        %1580 = vmatprep.subr.bf16.mxu0 0
        %1581 = vmatpush2.bf16.msra.mxu0 0
        %1582 = vmatprep.subr.bf16.mxu0 0
        %1583 = vmatpush2.bf16.msra.mxu0 0
        %1584 = vmatprep.subr.bf16.mxu0 0
        %1585 = vmatpush2.bf16.msra.mxu0 0
        %1586 = vmatprep.subr.bf16.mxu0 0
        %1587 = vmatpush2.bf16.msra.mxu0 0
        %1588 = vmatprep.subr.bf16.mxu0 0
        %1589 = vmatpush2.bf16.msra.mxu0 0
        %1590 = vmatprep.subr.bf16.mxu0 0
        %1591 = vmatpush2.bf16.msra.mxu0 0
        %1592 = vmatprep.subr.bf16.mxu0 0
        %1593 = vmatpush2.bf16.msra.mxu0 0
        %1594 = vmatprep.mubr.bf16.mxu0 0
        %1595 = vmatmul.mubr.bf16.gmra.mxu0 %v1557
        %v1596 = vpop.f32.mrf.mxu0
        %v1597 = vadd.f32 0.0, %v1596
        %v1598 = vpop.f32.mrf.mxu0
        %v1599 = vpop.f32.mrf.mxu0
        %v1600 = vpop.f32.mrf.mxu0
        %1601 = vdwg.mxu0
        %v1603 = vsel %vm1153, %v1462, 0
        %v1606 = vsel %vm1466, %v1152, 0
        %1608 = vmatprep.subr.bf16.mxu0 0
        %1609 = vmatpush1.bf16.msra.mxu0 0
        %1610 = vmatprep.subr.bf16.mxu0 0
        %1611 = vmatpush1.bf16.msra.mxu0 0
        %1612 = vmatprep.subr.bf16.mxu0 0
        %1613 = vmatpush1.bf16.msra.mxu0 0
        %1614 = vmatprep.subr.bf16.mxu0 0
        %1615 = vmatpush1.bf16.msra.mxu0 0
        %1616 = vmatprep.subr.bf16.mxu0 0
        %1617 = vmatpush1.bf16.msra.mxu0 0
        %1618 = vmatprep.subr.bf16.mxu0 0
        %1619 = vmatpush1.bf16.msra.mxu0 0
        %1620 = vmatprep.subr.bf16.mxu0 0
        %1621 = vmatpush1.bf16.msra.mxu0 0
        %1622 = vmatprep.subr.bf16.mxu0 0
        %1623 = vmatpush1.bf16.msra.mxu0 %v1606
        %1624 = vmatprep.subr.bf16.mxu0 0
        %1625 = vmatpush2.bf16.msra.mxu0 0
        %1626 = vmatprep.subr.bf16.mxu0 0
        %1627 = vmatpush2.bf16.msra.mxu0 0
        %1628 = vmatprep.subr.bf16.mxu0 0
        %1629 = vmatpush2.bf16.msra.mxu0 0
        %1630 = vmatprep.subr.bf16.mxu0 0
        %1631 = vmatpush2.bf16.msra.mxu0 0
        %1632 = vmatprep.subr.bf16.mxu0 0
        %1633 = vmatpush2.bf16.msra.mxu0 0
        %1634 = vmatprep.subr.bf16.mxu0 0
        %1635 = vmatpush2.bf16.msra.mxu0 0
        %1636 = vmatprep.subr.bf16.mxu0 0
        %1637 = vmatpush2.bf16.msra.mxu0 0
        %1638 = vmatprep.subr.bf16.mxu0 0
        %1639 = vmatpush2.bf16.msra.mxu0 0
        %1640 = vmatprep.mubr.bf16.mxu0 0
        %1641 = vmatmul.mubr.bf16.gmra.mxu0 %v1603
        %v1642 = vpop.f32.mrf.mxu0
        %v1643 = vadd.f32 0.0, %v1642
        %v1644 = vpop.f32.mrf.mxu0
        %v1645 = vpop.f32.mrf.mxu0
        %v1646 = vpop.f32.mrf.mxu0
        %1647 = vdwg.mxu0
        %v1648 = vadd.f32 %v1455, %v1505
        %v1649 = vadd.f32 %v1456, %v1551
        %v1650 = vadd.f32 %v1457, %v1597
        %v1651 = vadd.f32 %v1458, %v1643
        %1652 = vst.msk [vmem:[#allocation7] sm:$0xff] %vm1153, %v1648
        %1653 = vst.msk [vmem:[#allocation7 + $0x8] sm:$0xff] %vm1153, %v1649
        %1654 = vst.msk [vmem:[#allocation7 + $0x10] sm:$0xff] %vm1153, %v1650
        %1655 = vst.msk [vmem:[#allocation7 + $0x18] sm:$0xff] %vm1153, %v1651
        %1656 = vst.msk [vmem:[#allocation5] sm:$0xff] %vm1426, %v1354
        %1657 = vst.msk [vmem:[#allocation5 + $0x8] sm:$0xff] %vm1426, %v1355
        %1658 = vst.msk [vmem:[#allocation5 + $0x10] sm:$0xff] %vm1426, %v1356
        %1659 = vst.msk [vmem:[#allocation5 + $0x18] sm:$0xff] %vm1426, %v1357
        // Predicated region
        $region57: #{tpu_custom_call.1} parent=51 // pred_check
          %p1660 = pneg %p390
        $region58: #{tpu_custom_call.1} parent=51 // pred_check_branch
          %1662 = sbr.rel (%p1660) target = $region60
        $region59: #{tpu_custom_call.1} parent=51 // pred_region
          %v1663 = vld [vmem:[#allocation6] sm:$0xff]
          %v1664 = vld [vmem:[#allocation6 + $0x8] sm:$0xff]
          %v1665 = vld [vmem:[#allocation6 + $0x10] sm:$0xff]
          %v1666 = vld [vmem:[#allocation6 + $0x18] sm:$0xff]
          %v1667 = vrcp.pop %v1663
          %v1668 = vrcp.pop %v1664
          %v1669 = vrcp.pop %v1665
          %v1670 = vrcp.pop %v1666
          %v1671 = vld [vmem:[#allocation7] sm:$0xff]
          %v1672 = vld [vmem:[#allocation7 + $0x8] sm:$0xff]
          %v1673 = vld [vmem:[#allocation7 + $0x10] sm:$0xff]
          %v1674 = vld [vmem:[#allocation7 + $0x18] sm:$0xff]
          %1676 = vset.pattern.permute.xlu0 0
          %1677 = vperm.xlu0 %1676, %v1667
          %v1678 = vpop.permute.xlu0 %1677
          %1681 = vset.pattern.permute.xlu0 0
          %1682 = vperm.xlu0 %1681, %v1668
          %v1683 = vpop.permute.xlu0 %1682
          %1686 = vset.pattern.permute.xlu0 0
          %1687 = vperm.xlu0 %1686, %v1669
          %v1688 = vpop.permute.xlu0 %1687
          %1691 = vset.pattern.permute.xlu0 0
          %1692 = vperm.xlu0 %1691, %v1670
          %v1693 = vpop.permute.xlu0 %1692
          %v1695 = vmul.f32 %v1671, %v1678
          %v1696 = vmul.f32 %v1672, %v1683
          %v1697 = vmul.f32 %v1673, %v1688
          %v1698 = vmul.f32 %v1674, %v1693
          %v1699 = vpack.c.bf16 %v1695, %v1695
          %v1700 = vld [vmem:[%s6] sm:$0xf]
          %v1701 = vpack.c.bf16 %v1696, %v1696
          %s1702 = scalar_lea.vmem %s6, 4
          %v1703 = vld [vmem:[%s1702] sm:$0xf]
          %v1705 = vsel %vm1153, %v1701, 0
          %v1708 = vsel %vm1466, %v1703, 0
          %1710 = vmatprep.subr.bf16.mxu0 0
          %1711 = vmatpush1.bf16.msra.mxu0 0
          %1712 = vmatprep.subr.bf16.mxu0 0
          %1713 = vmatpush1.bf16.msra.mxu0 0
          %1714 = vmatprep.subr.bf16.mxu0 0
          %1715 = vmatpush1.bf16.msra.mxu0 0
          %1716 = vmatprep.subr.bf16.mxu0 0
          %1717 = vmatpush1.bf16.msra.mxu0 0
          %1718 = vmatprep.subr.bf16.mxu0 0
          %1719 = vmatpush1.bf16.msra.mxu0 0
          %1720 = vmatprep.subr.bf16.mxu0 0
          %1721 = vmatpush1.bf16.msra.mxu0 0
          %1722 = vmatprep.subr.bf16.mxu0 0
          %1723 = vmatpush1.bf16.msra.mxu0 0
          %1724 = vmatprep.subr.bf16.mxu0 0
          %1725 = vmatpush1.bf16.msra.mxu0 %v1708
          %1726 = vmatprep.subr.bf16.mxu0 0
          %1727 = vmatpush2.bf16.msra.mxu0 0
          %1728 = vmatprep.subr.bf16.mxu0 0
          %1729 = vmatpush2.bf16.msra.mxu0 0
          %1730 = vmatprep.subr.bf16.mxu0 0
          %1731 = vmatpush2.bf16.msra.mxu0 0
          %1732 = vmatprep.subr.bf16.mxu0 0
          %1733 = vmatpush2.bf16.msra.mxu0 0
          %1734 = vmatprep.subr.bf16.mxu0 0
          %1735 = vmatpush2.bf16.msra.mxu0 0
          %1736 = vmatprep.subr.bf16.mxu0 0
          %1737 = vmatpush2.bf16.msra.mxu0 0
          %1738 = vmatprep.subr.bf16.mxu0 0
          %1739 = vmatpush2.bf16.msra.mxu0 0
          %1740 = vmatprep.subr.bf16.mxu0 0
          %1741 = vmatpush2.bf16.msra.mxu0 0
          %1742 = vmatprep.mubr.bf16.mxu0 0
          %1743 = vmatmul.mubr.bf16.gmra.mxu0 %v1705
          %v1744 = vpop.f32.mrf.mxu0
          %v1745 = vadd.f32 0.0, %v1744
          %v1746 = vpop.f32.mrf.mxu0
          %v1747 = vpop.f32.mrf.mxu0
          %v1748 = vpop.f32.mrf.mxu0
          %1749 = vdwg.mxu0
          %v1751 = vsel %vm1153, %v1699, 0
          %v1754 = vsel %vm1466, %v1700, 0
          %1756 = vmatprep.subr.bf16.mxu0 0
          %1757 = vmatpush1.bf16.msra.mxu0 0
          %1758 = vmatprep.subr.bf16.mxu0 0
          %1759 = vmatpush1.bf16.msra.mxu0 0
          %1760 = vmatprep.subr.bf16.mxu0 0
          %1761 = vmatpush1.bf16.msra.mxu0 0
          %1762 = vmatprep.subr.bf16.mxu0 0
          %1763 = vmatpush1.bf16.msra.mxu0 0
          %1764 = vmatprep.subr.bf16.mxu0 0
          %1765 = vmatpush1.bf16.msra.mxu0 0
          %1766 = vmatprep.subr.bf16.mxu0 0
          %1767 = vmatpush1.bf16.msra.mxu0 0
          %1768 = vmatprep.subr.bf16.mxu0 0
          %1769 = vmatpush1.bf16.msra.mxu0 0
          %1770 = vmatprep.subr.bf16.mxu0 0
          %1771 = vmatpush1.bf16.msra.mxu0 %v1754
          %1772 = vmatprep.subr.bf16.mxu0 0
          %1773 = vmatpush2.bf16.msra.mxu0 0
          %1774 = vmatprep.subr.bf16.mxu0 0
          %1775 = vmatpush2.bf16.msra.mxu0 0
          %1776 = vmatprep.subr.bf16.mxu0 0
          %1777 = vmatpush2.bf16.msra.mxu0 0
          %1778 = vmatprep.subr.bf16.mxu0 0
          %1779 = vmatpush2.bf16.msra.mxu0 0
          %1780 = vmatprep.subr.bf16.mxu0 0
          %1781 = vmatpush2.bf16.msra.mxu0 0
          %1782 = vmatprep.subr.bf16.mxu0 0
          %1783 = vmatpush2.bf16.msra.mxu0 0
          %1784 = vmatprep.subr.bf16.mxu0 0
          %1785 = vmatpush2.bf16.msra.mxu0 0
          %1786 = vmatprep.subr.bf16.mxu0 0
          %1787 = vmatpush2.bf16.msra.mxu0 0
          %1788 = vmatprep.mubr.bf16.mxu0 0
          %1789 = vmatmul.mubr.bf16.gmra.mxu0 %v1751
          %v1790 = vpop.f32.mrf.mxu0
          %v1791 = vadd.f32 %v1745, %v1790
          %v1792 = vpop.f32.mrf.mxu0
          %v1793 = vpop.f32.mrf.mxu0
          %v1794 = vpop.f32.mrf.mxu0
          %1795 = vdwg.mxu0
          %v1796 = vpack.c.bf16 %v1697, %v1697
          %s1797 = scalar_lea.vmem %s6, 8
          %v1798 = vld [vmem:[%s1797] sm:$0xf]
          %v1800 = vsel %vm1153, %v1796, 0
          %v1803 = vsel %vm1466, %v1798, 0
          %1805 = vmatprep.subr.bf16.mxu0 0
          %1806 = vmatpush1.bf16.msra.mxu0 0
          %1807 = vmatprep.subr.bf16.mxu0 0
          %1808 = vmatpush1.bf16.msra.mxu0 0
          %1809 = vmatprep.subr.bf16.mxu0 0
          %1810 = vmatpush1.bf16.msra.mxu0 0
          %1811 = vmatprep.subr.bf16.mxu0 0
          %1812 = vmatpush1.bf16.msra.mxu0 0
          %1813 = vmatprep.subr.bf16.mxu0 0
          %1814 = vmatpush1.bf16.msra.mxu0 0
          %1815 = vmatprep.subr.bf16.mxu0 0
          %1816 = vmatpush1.bf16.msra.mxu0 0
          %1817 = vmatprep.subr.bf16.mxu0 0
          %1818 = vmatpush1.bf16.msra.mxu0 0
          %1819 = vmatprep.subr.bf16.mxu0 0
          %1820 = vmatpush1.bf16.msra.mxu0 %v1803
          %1821 = vmatprep.subr.bf16.mxu0 0
          %1822 = vmatpush2.bf16.msra.mxu0 0
          %1823 = vmatprep.subr.bf16.mxu0 0
          %1824 = vmatpush2.bf16.msra.mxu0 0
          %1825 = vmatprep.subr.bf16.mxu0 0
          %1826 = vmatpush2.bf16.msra.mxu0 0
          %1827 = vmatprep.subr.bf16.mxu0 0
          %1828 = vmatpush2.bf16.msra.mxu0 0
          %1829 = vmatprep.subr.bf16.mxu0 0
          %1830 = vmatpush2.bf16.msra.mxu0 0
          %1831 = vmatprep.subr.bf16.mxu0 0
          %1832 = vmatpush2.bf16.msra.mxu0 0
          %1833 = vmatprep.subr.bf16.mxu0 0
          %1834 = vmatpush2.bf16.msra.mxu0 0
          %1835 = vmatprep.subr.bf16.mxu0 0
          %1836 = vmatpush2.bf16.msra.mxu0 0
          %1837 = vmatprep.mubr.bf16.mxu0 0
          %1838 = vmatmul.mubr.bf16.gmra.mxu0 %v1800
          %v1839 = vpop.f32.mrf.mxu0
          %v1840 = vadd.f32 0.0, %v1839
          %v1841 = vpop.f32.mrf.mxu0
          %v1842 = vpop.f32.mrf.mxu0
          %v1843 = vpop.f32.mrf.mxu0
          %1844 = vdwg.mxu0
          %v1845 = vadd.f32 %v1791, %v1840
          %v1846 = vpack.c.bf16 %v1698, %v1698
          %s1847 = scalar_lea.vmem %s6, 12
          %v1848 = vld [vmem:[%s1847] sm:$0xf]
          %v1850 = vsel %vm1153, %v1846, 0
          %v1853 = vsel %vm1466, %v1848, 0
          %1855 = vmatprep.subr.bf16.mxu0 0
          %1856 = vmatpush1.bf16.msra.mxu0 0
          %1857 = vmatprep.subr.bf16.mxu0 0
          %1858 = vmatpush1.bf16.msra.mxu0 0
          %1859 = vmatprep.subr.bf16.mxu0 0
          %1860 = vmatpush1.bf16.msra.mxu0 0
          %1861 = vmatprep.subr.bf16.mxu0 0
          %1862 = vmatpush1.bf16.msra.mxu0 0
          %1863 = vmatprep.subr.bf16.mxu0 0
          %1864 = vmatpush1.bf16.msra.mxu0 0
          %1865 = vmatprep.subr.bf16.mxu0 0
          %1866 = vmatpush1.bf16.msra.mxu0 0
          %1867 = vmatprep.subr.bf16.mxu0 0
          %1868 = vmatpush1.bf16.msra.mxu0 0
          %1869 = vmatprep.subr.bf16.mxu0 0
          %1870 = vmatpush1.bf16.msra.mxu0 %v1853
          %1871 = vmatprep.subr.bf16.mxu0 0
          %1872 = vmatpush2.bf16.msra.mxu0 0
          %1873 = vmatprep.subr.bf16.mxu0 0
          %1874 = vmatpush2.bf16.msra.mxu0 0
          %1875 = vmatprep.subr.bf16.mxu0 0
          %1876 = vmatpush2.bf16.msra.mxu0 0
          %1877 = vmatprep.subr.bf16.mxu0 0
          %1878 = vmatpush2.bf16.msra.mxu0 0
          %1879 = vmatprep.subr.bf16.mxu0 0
          %1880 = vmatpush2.bf16.msra.mxu0 0
          %1881 = vmatprep.subr.bf16.mxu0 0
          %1882 = vmatpush2.bf16.msra.mxu0 0
          %1883 = vmatprep.subr.bf16.mxu0 0
          %1884 = vmatpush2.bf16.msra.mxu0 0
          %1885 = vmatprep.subr.bf16.mxu0 0
          %1886 = vmatpush2.bf16.msra.mxu0 0
          %1887 = vmatprep.mubr.bf16.mxu0 0
          %1888 = vmatmul.mubr.bf16.gmra.mxu0 %v1850
          %v1889 = vpop.f32.mrf.mxu0
          %v1890 = vadd.f32 0.0, %v1889
          %v1891 = vpop.f32.mrf.mxu0
          %v1892 = vpop.f32.mrf.mxu0
          %v1893 = vpop.f32.mrf.mxu0
          %1894 = vdwg.mxu0
          %v1895 = vadd.f32 %v1845, %v1890
          %v1896 = vld [vmem:[%s7] sm:$0x1]
          %v1898 = vlaneseq
          %v1899 = vshrl.u32 %v1898, 7
          %v1900 = vsub.s32 0, %v1899
          %v1901 = vrot.slane %v1896, %v1900
          %v1903 = vadd.f32 %v1895, %v1901
          %1904 = vst.msk [vmem:[%s367] sm:$0xff] %vm673, %v1903
        $region60: #{tpu_custom_call.1} parent=51 // pred_fallthru
          _
        %s1905 = sand.u32 %s240, 1
        %s1906 = scalar_lea.sflag [#allocation9], %s1905
        %s1907 = sand.u32 %s240, 1
        %s1908 = smul.addr %s1907, 8
        %s1909 = scalar_lea.vmem [#allocation8], %s1908
        // Predicated region
        $region61: #{tpu_custom_call.1} parent=51 // pred_check
          %p1910 = pneg %p250
        $region62: #{tpu_custom_call.1} parent=51 // pred_check_branch
          %1912 = sbr.rel (%p1910) target = $region64
        $region63: #{tpu_custom_call.1} parent=51 // pred_region
          %s1914 = ssub.s32 128, 128
          %1915 = vsyncadd %s1906, %s1914
          %s1916 = sadd.s32 %s28, %s27
          %s1917 = smul.addr %s1916, 128
          %s1918 = scalar_lea.hbm %s8, %s1917
          %s1920 = sshll.u32 %s1909, 4
          %s1921 = int_to_ptr.vmem [resolvable:$true] %s1920
          %1923 = dma.vmem_to_hbm [thread:$0]  %s1921, 128, %s1918, %s1906
        $region64: #{tpu_custom_call.1} parent=51 // pred_fallthru
          _
      $region52: #{tpu_custom_call.1} parent=5 // pred_fallthru
        _
      %p1924 = scmp.le.s32.totalorder 2, %s17
      // Predicated region
      $region65: #{tpu_custom_call.1} parent=5 // pred_check
        %p1925 = pneg %p1924
      $region66: #{tpu_custom_call.1} parent=5 // pred_check_branch
        %1927 = sbr.rel (%p1925) target = $region68
      $region67: #{tpu_custom_call.1} parent=5 // pred_region
        %s1928 = ssub.s32 %s17, 2
        // Predicated region
        $region69: #{tpu_custom_call.1} parent=67 // pred_check
          %p1929 = pneg %p256
        $region70: #{tpu_custom_call.1} parent=67 // pred_check_branch
          %1931 = sbr.rel (%p1929) target = $region72
        $region71: #{tpu_custom_call.1} parent=67 // pred_region
          %s1932 = sand.u32 %s241, 1
          %s1933 = scalar_lea.sflag [#allocation9], %s1932
          %s1934 = sand.u32 %s241, 1
          %s1935 = smul.addr %s1934, 8
          %s1936 = scalar_lea.vmem [#allocation8], %s1935
          %1937 = dma.done %s1933, 128
        $region72: #{tpu_custom_call.1} parent=67 // pred_fallthru
          _
      $region68: #{tpu_custom_call.1} parent=5 // pred_fallthru
        _
    $region6: #{tpu_custom_call.1} parent=1 // loop_footer
      %s21 = sadd.s32 1, %s17
    $region7: #{tpu_custom_call.1} parent=1 // loop_footer_branch
      %16 = sbr.rel target = $region3
    $region8: #{tpu_custom_call.1} parent=1 // loop_exit
      _
    %1938 = vsyncpa [#allocation9], 1
    %s1939 = scalar_lea.sflag [#allocation9], 1
    %1940 = vsyncpa %s1939, 1

</llo_original>
